<compile_context>
chip_gen: v7x
topology: tpu7x:2x2x1
jax: 0.10.0
libtpu: 0.0.40
codegen_flags: <defaults>
</compile_context>

<pallas_src>
import jax
import jax.numpy as jnp
from jax import lax
from jax.experimental import pallas as pl
from jax.experimental.pallas import tpu as pltpu

NEG_SLOPE = 0.01   # torch.nn.LeakyReLU default negative_slope
EPSILON = 1e-6


def _round_up(x, m):
    return (x + m - 1) // m * m


def _leaky_relu(h):
    # maximum(h, 0.01*h) == LeakyReLU(h) since 0 < slope < 1.  (2 VALU ops, no select)
    return jnp.maximum(h, NEG_SLOPE * h)


def mlp_normal_kernel(x_ref, w1_ref, b1_ref, w2_ref, b2_ref, w3_ref, b3_ref, o_ref):
    """One batch-tile of the fused forward pass.

    x_ref: (TB, D) natural layout (batch on sublanes at the input).
    w_k:   (out_k, in_k)   b_k: (out_k, 1)   o_ref: (2, TB)  (batch on lanes).
    """
    x = x_ref[...]                                                        # (TB, D)

    # Layer 1: fold the tile transpose into the matmul: contract dim 1 of w1 (in_features)
    # with dim 1 of x (D) -> (H1, TB).  Batch moves onto the 128-lane axis here.
    h = lax.dot_general(
        w1_ref[...], x, (((1,), (1,)), ((), ())),
        preferred_element_type=jnp.float32,
        precision=lax.Precision.HIGHEST,
    ) + b1_ref[...]
    h = _leaky_relu(h)                                                    # (H1, TB)

    # Dropout(p=0.0) is the identity in the forward pass -> omitted.

    # Layer 2: Linear + LeakyReLU
    h = jnp.dot(w2_ref[...], h, preferred_element_type=jnp.float32,
                precision=lax.Precision.HIGHEST) + b2_ref[...]
    h = _leaky_relu(h)                                                    # (H2, TB)

    # Output layer: Linear to 2 units
    y = jnp.dot(w3_ref[...], h, preferred_element_type=jnp.float32,
                precision=lax.Precision.HIGHEST) + b3_ref[...]            # (2, TB)

    # Epilogue: direct sublane-slice stores (no concat temp).
    o_ref[0:1, :] = y[0:1, :].astype(o_ref.dtype)
    o_ref[1:2, :] = (jnp.maximum(y[1:2, :], 0.0) + EPSILON).astype(o_ref.dtype)


def _choose_tile(B, tb):
    """Pick a batch tile satisfying the (8,128) block constraints."""
    if B <= 256:
        return B                              # single tile; all block dims == full dims
    tb = max(128, (tb // 128) * 128)          # lane-aligned cap
    half = _round_up(pl.cdiv(B, 2), 128)      # keep >= 2 tiles so both v7x TCs get work
    return min(tb, half)


def mlp_normal_forward(x, params, *, tb=8192):
    """x: (B, input_dim) float32. params: w_k of shape (out, in), b_k of shape (out, 1)."""
    w1, b1 = params["w1"], params["b1"]
    w2, b2 = params["w2"], params["b2"]
    w3, b3 = params["w3"], params["b3"]

    B, input_dim = x.shape
    h1 = w1.shape[0]
    h2 = w2.shape[0]

    TB = _choose_tile(B, tb)
    grid = (pl.cdiv(B, TB),)                  # ragged last block handled by Pallas

    flops = 2 * B * (input_dim * h1 + h1 * h2 + h2 * 2)
    bytes_accessed = 4 * (
        B * input_dim + B * 2                              # x stream + output stream
        + input_dim * h1 + h1 + h1 * h2 + h2 + h2 * 2 + 2  # weights + biases (resident)
    )

    def resident(shape):
        # Weights / biases: same (0, 0) block every grid step -> stay in VMEM.
        return pl.BlockSpec(shape, lambda i: (0, 0))

    out_t = pl.pallas_call(
        mlp_normal_kernel,
        out_shape=jax.ShapeDtypeStruct((2, B), jnp.float32),
        grid=grid,
        in_specs=[
            pl.BlockSpec((TB, input_dim), lambda i: (i, 0)),   # natural-layout x tile
            resident(w1.shape), resident(b1.shape),
            resident(w2.shape), resident(b2.shape),
            resident(w3.shape), resident(b3.shape),
        ],
        out_specs=pl.BlockSpec((2, TB), lambda i: (0, i)),     # lane-dense output tile
        compiler_params=pltpu.CompilerParams(
            dimension_semantics=("parallel",),                 # v7x: shard tiles across 2 TCs
        ),
        cost_estimate=pl.CostEstimate(
            flops=flops, transcendentals=0, bytes_accessed=bytes_accessed),
    )(x, w1, b1, w2, b2, w3, b3)

    return out_t.T                                             # (B, 2); tiny (8 B/row) pass


def init_params(key, input_dim, hidden_units):
    """Deterministic synthetic init (uniform, roughly matching PyTorch fan-in scaling).

    Weights stored PyTorch-style as (out_features, in_features); biases as (out, 1).
    """
    dims = [input_dim] + list(hidden_units) + [2]
    params = {}
    keys = jax.random.split(key, 2 * (len(dims) - 1))
    for i in range(len(dims) - 1):
        fan_in, fan_out = dims[i], dims[i + 1]
        bound = 1.0 / jnp.sqrt(fan_in)
        w = jax.random.uniform(keys[2 * i], (fan_out, fan_in),
                               minval=-bound, maxval=bound, dtype=jnp.float32)
        b = jax.random.uniform(keys[2 * i + 1], (fan_out, 1),
                               minval=-bound, maxval=bound, dtype=jnp.float32)
        params[f"w{i + 1}"] = w
        params[f"b{i + 1}"] = b
    return params


def reference_forward(x, params):
    """Plain-JAX reference mirroring the PyTorch forward."""
    h = x @ params["w1"].T + params["b1"][:, 0]
    h = jnp.where(h > 0, h, NEG_SLOPE * h)
    h = h @ params["w2"].T + params["b2"][:, 0]
    h = jnp.where(h > 0, h, NEG_SLOPE * h)
    y = h @ params["w3"].T + params["b3"][:, 0]
    return jnp.concatenate(
        [y[:, 0:1], jnp.maximum(y[:, 1:2], 0.0) + EPSILON], axis=1)


if __name__ == "__main__":
    INPUT_DIM = 16
    HIDDEN_UNITS = [32, 32]

    key = jax.random.PRNGKey(0)
    key_x1, key_x2, key_p = jax.random.split(key, 3)
    params = init_params(key_p, INPUT_DIM, HIDDEN_UNITS)

    # Small batch (single tile, block dims == full array dims).
    x_small = jax.random.normal(key_x1, (8, INPUT_DIM), dtype=jnp.float32)
    out_small = jax.block_until_ready(mlp_normal_forward(x_small, params))
    ref_small = reference_forward(x_small, params)
    assert out_small.shape == (8, 2), out_small.shape
    assert jnp.allclose(out_small, ref_small, atol=1e-5, rtol=1e-5)

    # Larger batch exercising the multi-tile pipelined grid + ragged last block.
    x_big = jax.random.normal(key_x2, (300, INPUT_DIM), dtype=jnp.float32)
    out_big = jax.block_until_ready(mlp_normal_forward(x_big, params))
    ref_big = reference_forward(x_big, params)
    assert out_big.shape == (300, 2), out_big.shape
    assert jnp.allclose(out_big, ref_big, atol=1e-5, rtol=1e-5)

    print("KERNEL_OK")
</pallas_src>

<mosaic_0001>
module attributes {stable_mosaic.version = 11 : i64} {
  func.func @mlp_normal_kernel(%arg0: i32, %arg1: memref<8x16xf32, #tpu.memory_space<vmem>>, %arg2: memref<32x16xf32, #tpu.memory_space<vmem>>, %arg3: memref<32x1xf32, #tpu.memory_space<vmem>>, %arg4: memref<32x32xf32, #tpu.memory_space<vmem>>, %arg5: memref<32x1xf32, #tpu.memory_space<vmem>>, %arg6: memref<2x32xf32, #tpu.memory_space<vmem>>, %arg7: memref<2x1xf32, #tpu.memory_space<vmem>>, %arg8: memref<2x8xf32, #tpu.memory_space<vmem>>) attributes {dimension_semantics = [#tpu.dimension_semantics<parallel>], iteration_bounds = array<i64: 1>, scalar_prefetch = 0 : i64, scratch_operands = 0 : i64, tpu.core_type = #tpu.core_type<tc>, window_params = [{transform_indices = @transform_0, window_bounds = array<i64: 8, 16>}, {pipeline_mode = #tpu.pipeline_mode<synchronous>, transform_indices = @transform_1, window_bounds = array<i64: 32, 16>}, {pipeline_mode = #tpu.pipeline_mode<synchronous>, transform_indices = @transform_2, window_bounds = array<i64: 32, 1>}, {pipeline_mode = #tpu.pipeline_mode<synchronous>, transform_indices = @transform_3, window_bounds = array<i64: 32, 32>}, {pipeline_mode = #tpu.pipeline_mode<synchronous>, transform_indices = @transform_4, window_bounds = array<i64: 32, 1>}, {pipeline_mode = #tpu.pipeline_mode<synchronous>, transform_indices = @transform_5, window_bounds = array<i64: 2, 32>}, {pipeline_mode = #tpu.pipeline_mode<synchronous>, transform_indices = @transform_6, window_bounds = array<i64: 2, 1>}, {transform_indices = @transform_7, window_bounds = array<i64: 2, 8>}]} {
    %c0 = arith.constant 0 : index
    %c0_0 = arith.constant 0 : index
    %0 = vector.load %arg1[%c0, %c0_0] : memref<8x16xf32, #tpu.memory_space<vmem>>, vector<8x16xf32>
    %c0_1 = arith.constant 0 : index
    %c0_2 = arith.constant 0 : index
    %1 = vector.load %arg2[%c0_1, %c0_2] : memref<32x16xf32, #tpu.memory_space<vmem>>, vector<32x16xf32>
    %cst = arith.constant dense<0.000000e+00> : vector<32x8xf32>
    %2 = tpu.matmul %1, %0, %cst {dimension_numbers = #tpu.dot_dimension_numbers<[1], [1], [0], [0], [0, 0, 1, 0], [], []>, precision = #tpu.contract_precision<fp32>} : vector<32x16xf32>, vector<8x16xf32>, vector<32x8xf32> -> vector<32x8xf32>
    %c0_3 = arith.constant 0 : index
    %c0_4 = arith.constant 0 : index
    %3 = vector.load %arg3[%c0_3, %c0_4] : memref<32x1xf32, #tpu.memory_space<vmem>>, vector<32x1xf32>
    %4 = vector.broadcast %3 : vector<32x1xf32> to vector<32x8xf32>
    %5 = arith.addf %2, %4 : vector<32x8xf32>
    %cst_5 = arith.constant 0.00999999977 : f32
    %6 = vector.broadcast %cst_5 : f32 to vector<32x8xf32>
    %7 = arith.mulf %6, %5 : vector<32x8xf32>
    %8 = arith.maximumf %5, %7 : vector<32x8xf32>
    %c0_6 = arith.constant 0 : index
    %c0_7 = arith.constant 0 : index
    %9 = vector.load %arg4[%c0_6, %c0_7] : memref<32x32xf32, #tpu.memory_space<vmem>>, vector<32x32xf32>
    %cst_8 = arith.constant dense<0.000000e+00> : vector<32x8xf32>
    %10 = tpu.matmul %9, %8, %cst_8 {dimension_numbers = #tpu.dot_dimension_numbers<[1], [0], [0], [1], [0, 0, 1, 1], [], []>, precision = #tpu.contract_precision<fp32>} : vector<32x32xf32>, vector<32x8xf32>, vector<32x8xf32> -> vector<32x8xf32>
    %c0_9 = arith.constant 0 : index
    %c0_10 = arith.constant 0 : index
    %11 = vector.load %arg5[%c0_9, %c0_10] : memref<32x1xf32, #tpu.memory_space<vmem>>, vector<32x1xf32>
    %12 = vector.broadcast %11 : vector<32x1xf32> to vector<32x8xf32>
    %13 = arith.addf %10, %12 : vector<32x8xf32>
    %cst_11 = arith.constant 0.00999999977 : f32
    %14 = vector.broadcast %cst_11 : f32 to vector<32x8xf32>
    %15 = arith.mulf %14, %13 : vector<32x8xf32>
    %16 = arith.maximumf %13, %15 : vector<32x8xf32>
    %c0_12 = arith.constant 0 : index
    %c0_13 = arith.constant 0 : index
    %17 = vector.load %arg6[%c0_12, %c0_13] : memref<2x32xf32, #tpu.memory_space<vmem>>, vector<2x32xf32>
    %cst_14 = arith.constant dense<0.000000e+00> : vector<2x8xf32>
    %18 = tpu.matmul %17, %16, %cst_14 {dimension_numbers = #tpu.dot_dimension_numbers<[1], [0], [0], [1], [0, 0, 1, 1], [], []>, precision = #tpu.contract_precision<fp32>} : vector<2x32xf32>, vector<32x8xf32>, vector<2x8xf32> -> vector<2x8xf32>
    %c0_15 = arith.constant 0 : index
    %c0_16 = arith.constant 0 : index
    %19 = vector.load %arg7[%c0_15, %c0_16] : memref<2x1xf32, #tpu.memory_space<vmem>>, vector<2x1xf32>
    %20 = vector.broadcast %19 : vector<2x1xf32> to vector<2x8xf32>
    %21 = arith.addf %18, %20 : vector<2x8xf32>
    %22 = vector.extract_strided_slice %21 {offsets = [0, 0], sizes = [1, 8], strides = [1, 1]} : vector<2x8xf32> to vector<1x8xf32>
    %c0_17 = arith.constant 0 : index
    %c0_18 = arith.constant 0 : index
    %23 = vector.load %arg8[%c0_17, %c0_18] : memref<2x8xf32, #tpu.memory_space<vmem>>, vector<1x8xf32>
    tpu.vector_store %arg8[%c0_17, %c0_18], %22 {strides = array<i32>} : memref<2x8xf32, #tpu.memory_space<vmem>>, vector<1x8xf32>,
    %24 = vector.extract_strided_slice %21 {offsets = [1, 0], sizes = [1, 8], strides = [1, 1]} : vector<2x8xf32> to vector<1x8xf32>
    %cst_19 = arith.constant 0.000000e+00 : f32
    %25 = vector.broadcast %cst_19 : f32 to vector<1x8xf32>
    %26 = arith.maximumf %24, %25 : vector<1x8xf32>
    %cst_20 = arith.constant 9.99999997E-7 : f32
    %27 = vector.broadcast %cst_20 : f32 to vector<1x8xf32>
    %28 = arith.addf %26, %27 : vector<1x8xf32>
    %c1 = arith.constant 1 : index
    %c0_21 = arith.constant 0 : index
    %29 = vector.load %arg8[%c1, %c0_21] : memref<2x8xf32, #tpu.memory_space<vmem>>, vector<1x8xf32>
    tpu.vector_store %arg8[%c1, %c0_21], %28 {strides = array<i32>} : memref<2x8xf32, #tpu.memory_space<vmem>>, vector<1x8xf32>,
    return
  }
  func.func @transform_0(%arg0: i32) -> (i32, i32) {
    %c0_i32 = arith.constant 0 : i32
    %c0_i32_0 = arith.constant 0 : i32
    return %arg0, %c0_i32 : i32, i32
  }
  func.func @transform_1(%arg0: i32) -> (i32, i32) {
    %c0_i32 = arith.constant 0 : i32
    %c0_i32_0 = arith.constant 0 : i32
    %c0_i32_1 = arith.constant 0 : i32
    return %c0_i32, %c0_i32_0 : i32, i32
  }
  func.func @transform_2(%arg0: i32) -> (i32, i32) {
    %c0_i32 = arith.constant 0 : i32
    %c0_i32_0 = arith.constant 0 : i32
    %c0_i32_1 = arith.constant 0 : i32
    return %c0_i32, %c0_i32_0 : i32, i32
  }
  func.func @transform_3(%arg0: i32) -> (i32, i32) {
    %c0_i32 = arith.constant 0 : i32
    %c0_i32_0 = arith.constant 0 : i32
    %c0_i32_1 = arith.constant 0 : i32
    return %c0_i32, %c0_i32_0 : i32, i32
  }
  func.func @transform_4(%arg0: i32) -> (i32, i32) {
    %c0_i32 = arith.constant 0 : i32
    %c0_i32_0 = arith.constant 0 : i32
    %c0_i32_1 = arith.constant 0 : i32
    return %c0_i32, %c0_i32_0 : i32, i32
  }
  func.func @transform_5(%arg0: i32) -> (i32, i32) {
    %c0_i32 = arith.constant 0 : i32
    %c0_i32_0 = arith.constant 0 : i32
    %c0_i32_1 = arith.constant 0 : i32
    return %c0_i32, %c0_i32_0 : i32, i32
  }
  func.func @transform_6(%arg0: i32) -> (i32, i32) {
    %c0_i32 = arith.constant 0 : i32
    %c0_i32_0 = arith.constant 0 : i32
    %c0_i32_1 = arith.constant 0 : i32
    return %c0_i32, %c0_i32_0 : i32, i32
  }
  func.func @transform_7(%arg0: i32) -> (i32, i32) {
    %c0_i32 = arith.constant 0 : i32
    %c0_i32_0 = arith.constant 0 : i32
    return %c0_i32, %arg0 : i32, i32
  }
}

</mosaic_0001>

<llo_original>
// kernel: tpu_custom_call.1
$region0: #{tpu_custom_call.1}
  #allocation0 [shape = 'u32[]', space=smem, size = 0x4, offset = 0x4, fixed_abs, tag = 'smem constant byte address 0x4 - core index']
  #allocation1 [shape = 'u32[144,128]{1,0:T(1,128)}', space=vmem, size = 0x12000, scoped, tag = 'internal scratch']
  %s0 = inlined_call_operand.vmem [shape: f32[8,16], index: 0, kind: input, shape index: {}]
  %s1 = inlined_call_operand.vmem [shape: f32[32,16], index: 1, kind: input, shape index: {}]
  %s2 = inlined_call_operand.vmem [shape: f32[32,1], index: 2, kind: input, shape index: {}]
  %s3 = inlined_call_operand.vmem [shape: f32[32,32], index: 3, kind: input, shape index: {}]
  %s4 = inlined_call_operand.vmem [shape: f32[32,1], index: 4, kind: input, shape index: {}]
  %s5 = inlined_call_operand.vmem [shape: f32[2,32], index: 5, kind: input, shape index: {}]
  %s6 = inlined_call_operand.vmem [shape: f32[2,1], index: 6, kind: input, shape index: {}]
  %s7 = inlined_call_operand.hbm [shape: f32[2,8], index: 7, kind: output, shape index: {}]
  %s8 = sld [smem:[#allocation0]]
  $region38: #{tpu_custom_call.1} parent=0
    _
  %s10 = ssub.s32 1, %s8
  %s11 = scalar_select 0, %s10, %s8
  $region1: #{tpu_custom_call.1} parent=0
    #allocation2 [shape = 'u8[1024]{0}', space=vmem, size = 0x400, scoped, tag = 'output window, operand 0, single buffered']
    #allocation3 [shape = 's32[1]{0}', space=sflag, size = 0x4, scoped, tag = 'scoped memory for tpu_custom_call.1']
    %12 = vsyncpa [#allocation3], 0
    // Predicated region
    $region2: #{tpu_custom_call.1} parent=1 // pred_check
      _
    $region3: #{tpu_custom_call.1} parent=1 // pred_check_branch
      %14 = sbr.rel (0) target = $region5
    $region4: #{tpu_custom_call.1} parent=1 // pred_region
      _
    $region5: #{tpu_custom_call.1} parent=1 // pred_fallthru
      _
    // Predicated region
    $region6: #{tpu_custom_call.1} parent=1 // pred_check
      _
    $region7: #{tpu_custom_call.1} parent=1 // pred_check_branch
      %16 = sbr.rel (0) target = $region9
    $region8: #{tpu_custom_call.1} parent=1 // pred_region
      _
    $region9: #{tpu_custom_call.1} parent=1 // pred_fallthru
      _
    // Predicated region
    $region10: #{tpu_custom_call.1} parent=1 // pred_check
      _
    $region11: #{tpu_custom_call.1} parent=1 // pred_check_branch
      %18 = sbr.rel (0) target = $region13
    $region12: #{tpu_custom_call.1} parent=1 // pred_region
      _
    $region13: #{tpu_custom_call.1} parent=1 // pred_fallthru
      _
    // Predicated region
    $region14: #{tpu_custom_call.1} parent=1 // pred_check
      _
    $region15: #{tpu_custom_call.1} parent=1 // pred_check_branch
      %20 = sbr.rel (0) target = $region17
    $region16: #{tpu_custom_call.1} parent=1 // pred_region
      _
    $region17: #{tpu_custom_call.1} parent=1 // pred_fallthru
      _
    // Predicated region
    $region18: #{tpu_custom_call.1} parent=1 // pred_check
      _
    $region19: #{tpu_custom_call.1} parent=1 // pred_check_branch
      %22 = sbr.rel (0) target = $region21
    $region20: #{tpu_custom_call.1} parent=1 // pred_region
      _
    $region21: #{tpu_custom_call.1} parent=1 // pred_fallthru
      _
    // Predicated region
    $region22: #{tpu_custom_call.1} parent=1 // pred_check
      _
    $region23: #{tpu_custom_call.1} parent=1 // pred_check_branch
      %24 = sbr.rel (0) target = $region25
    $region24: #{tpu_custom_call.1} parent=1 // pred_region
      _
    $region25: #{tpu_custom_call.1} parent=1 // pred_fallthru
      _
    // Predicated region
    $region26: #{tpu_custom_call.1} parent=1 // pred_check
      _
    $region27: #{tpu_custom_call.1} parent=1 // pred_check_branch
      %26 = sbr.rel (0) target = $region29
    $region28: #{tpu_custom_call.1} parent=1 // pred_region
      _
    $region29: #{tpu_custom_call.1} parent=1 // pred_fallthru
      _
    %v27 = vld [vmem:[%s0] sm:$0xff]
    %v28 = vld [vmem:[%s1] sm:$0xff]
    %v29 = vld [vmem:[%s1 + $0x8] sm:$0xff]
    %v30 = vld [vmem:[%s1 + $0x10] sm:$0xff]
    %v31 = vld [vmem:[%s1 + $0x18] sm:$0xff]
    %v32 = vld [vmem:[%s2] sm:$0xff]
    %v33 = vld [vmem:[%s2 + $0x8] sm:$0xff]
    %v34 = vld [vmem:[%s2 + $0x10] sm:$0xff]
    %v35 = vld [vmem:[%s2 + $0x18] sm:$0xff]
    %37 = vset.pattern.permute.xlu0 0
    %38 = vperm.xlu0 %37, %v32
    %v39 = vpop.permute.xlu0 %38
    %42 = vset.pattern.permute.xlu0 0
    %43 = vperm.xlu0 %42, %v33
    %v44 = vpop.permute.xlu0 %43
    %47 = vset.pattern.permute.xlu0 0
    %48 = vperm.xlu0 %47, %v34
    %v49 = vpop.permute.xlu0 %48
    %52 = vset.pattern.permute.xlu0 0
    %53 = vperm.xlu0 %52, %v35
    %v54 = vpop.permute.xlu0 %53
    %vm56 = vcmask 130048
    %v58 = vsel %vm56, %v28, 0
    %v61 = vsel %vm56, %v29, 0
    %v64 = vsel %vm56, %v30, 0
    %v67 = vsel %vm56, %v31, 0
    %v70 = vsel %vm56, %v27, 0
    %72 = vmatprep.subr.mxu0 0.0
    %v73 = vand.u32 %v70, 4294901760
    %74 = vmatpush1.xpose.msra.mxu0 %v73
    %75 = vmatprep.subr.mxu0 0.0
    %76 = vmatpush1.xpose.msra.mxu0 0.0
    %77 = vmatprep.subr.mxu0 0.0
    %78 = vmatpush1.xpose.msra.mxu0 0.0
    %79 = vmatprep.subr.mxu0 0.0
    %80 = vmatpush1.xpose.msra.mxu0 0.0
    %81 = vmatprep.subr.mxu0 0.0
    %82 = vmatpush1.xpose.msra.mxu0 0.0
    %83 = vmatprep.subr.mxu0 0.0
    %84 = vmatpush1.xpose.msra.mxu0 0.0
    %85 = vmatprep.subr.mxu0 0.0
    %86 = vmatpush1.xpose.msra.mxu0 0.0
    %87 = vmatprep.subr.mxu0 0.0
    %88 = vmatpush1.xpose.msra.mxu0 0.0
    %89 = vmatprep.subr.mxu0 0.0
    %90 = vmatpush1.xpose.msra.mxu0 0.0
    %91 = vmatprep.subr.mxu0 0.0
    %92 = vmatpush1.xpose.msra.mxu0 0.0
    %93 = vmatprep.subr.mxu0 0.0
    %94 = vmatpush1.xpose.msra.mxu0 0.0
    %95 = vmatprep.subr.mxu0 0.0
    %96 = vmatpush1.xpose.msra.mxu0 0.0
    %97 = vmatprep.subr.mxu0 0.0
    %98 = vmatpush1.xpose.msra.mxu0 0.0
    %99 = vmatprep.subr.mxu0 0.0
    %100 = vmatpush1.xpose.msra.mxu0 0.0
    %101 = vmatprep.subr.mxu0 0.0
    %102 = vmatpush1.xpose.msra.mxu0 0.0
    %103 = vmatprep.subr.mxu0 0.0
    %104 = vmatpush1.xpose.msra.mxu0 0.0
    %105 = vmatprep.subr.mxu0 0.0
    %106 = vmatpush1.xpose.msra.mxu0 0.0
    %107 = vmatprep.subr.mxu0 0.0
    %108 = vmatpush1.xpose.msra.mxu0 0.0
    %109 = vmatprep.subr.mxu0 0.0
    %110 = vmatpush1.xpose.msra.mxu0 0.0
    %111 = vmatprep.subr.mxu0 0.0
    %112 = vmatpush1.xpose.msra.mxu0 0.0
    %113 = vmatprep.subr.mxu0 0.0
    %114 = vmatpush1.xpose.msra.mxu0 0.0
    %115 = vmatprep.subr.mxu0 0.0
    %116 = vmatpush1.xpose.msra.mxu0 0.0
    %117 = vmatprep.subr.mxu0 0.0
    %118 = vmatpush1.xpose.msra.mxu0 0.0
    %119 = vmatprep.subr.mxu0 0.0
    %120 = vmatpush1.xpose.msra.mxu0 0.0
    %121 = vmatprep.subr.mxu0 0.0
    %122 = vmatpush1.xpose.msra.mxu0 0.0
    %123 = vmatprep.subr.mxu0 0.0
    %124 = vmatpush1.xpose.msra.mxu0 0.0
    %125 = vmatprep.subr.mxu0 0.0
    %126 = vmatpush1.xpose.msra.mxu0 0.0
    %127 = vmatprep.subr.mxu0 0.0
    %128 = vmatpush1.xpose.msra.mxu0 0.0
    %129 = vmatprep.subr.mxu0 0.0
    %130 = vmatpush1.xpose.msra.mxu0 0.0
    %131 = vmatprep.subr.mxu0 0.0
    %132 = vmatpush1.xpose.msra.mxu0 0.0
    %133 = vmatprep.subr.mxu0 0.0
    %134 = vmatpush1.xpose.msra.mxu0 0.0
    %135 = vmatprep.subr.mxu0 0.0
    %136 = vmatpush1.xpose.msra.mxu0 0.0
    %137 = vmatprep.mubr.f32.mxu0 0.0
    %v138 = vand.u32 %v58, 4294901760
    %v139 = vsub.f32 %v58, %v138
    %v140 = vand.u32 %v139, 4294901760
    %v141 = vsub.f32 %v139, %v140
    %v142 = vand.u32 %v141, 4294901760
    %143 = vmatmul.mubr.f32.gmra.mrb[0].mxu0 %v142
    %v144 = vpop.f32.mrb[0].mxu0
    %v145 = vadd.f32 %v39, %v144
    %v146 = vpop.f32.mrb[0].mxu0
    %147 = vmatprep.mubr.f32.mxu0 0.0
    %v148 = vand.u32 %v61, 4294901760
    %v149 = vsub.f32 %v61, %v148
    %v150 = vand.u32 %v149, 4294901760
    %v151 = vsub.f32 %v149, %v150
    %v152 = vand.u32 %v151, 4294901760
    %153 = vmatmul.mubr.f32.gmra.mrb[0].mxu0 %v152
    %v154 = vpop.f32.mrb[0].mxu0
    %v155 = vadd.f32 %v44, %v154
    %v156 = vpop.f32.mrb[0].mxu0
    %157 = vmatprep.mubr.f32.mxu0 0.0
    %v158 = vand.u32 %v64, 4294901760
    %v159 = vsub.f32 %v64, %v158
    %v160 = vand.u32 %v159, 4294901760
    %v161 = vsub.f32 %v159, %v160
    %v162 = vand.u32 %v161, 4294901760
    %163 = vmatmul.mubr.f32.gmra.mrb[0].mxu0 %v162
    %v164 = vpop.f32.mrb[0].mxu0
    %v165 = vadd.f32 %v49, %v164
    %v166 = vpop.f32.mrb[0].mxu0
    %167 = vmatprep.mubr.f32.mxu0 0.0
    %v168 = vand.u32 %v67, 4294901760
    %v169 = vsub.f32 %v67, %v168
    %v170 = vand.u32 %v169, 4294901760
    %v171 = vsub.f32 %v169, %v170
    %v172 = vand.u32 %v171, 4294901760
    %173 = vmatmul.mubr.f32.gmra.mrb[0].mxu0 %v172
    %v174 = vpop.f32.mrb[0].mxu0
    %v175 = vadd.f32 %v54, %v174
    %v176 = vpop.f32.mrb[0].mxu0
    %177 = vdwg.mxu0
    %178 = vmatprep.subr.mxu0 0.0
    %v179 = vand.u32 %v70, 4294901760
    %v180 = vsub.f32 %v70, %v179
    %v181 = vand.u32 %v180, 4294901760
    %v182 = vsub.f32 %v180, %v181
    %v183 = vand.u32 %v182, 4294901760
    %184 = vmatpush1.xpose.msra.mxu0 %v183
    %185 = vmatprep.subr.mxu0 0.0
    %186 = vmatpush1.xpose.msra.mxu0 0.0
    %187 = vmatprep.subr.mxu0 0.0
    %188 = vmatpush1.xpose.msra.mxu0 0.0
    %189 = vmatprep.subr.mxu0 0.0
    %190 = vmatpush1.xpose.msra.mxu0 0.0
    %191 = vmatprep.subr.mxu0 0.0
    %192 = vmatpush1.xpose.msra.mxu0 0.0
    %193 = vmatprep.subr.mxu0 0.0
    %194 = vmatpush1.xpose.msra.mxu0 0.0
    %195 = vmatprep.subr.mxu0 0.0
    %196 = vmatpush1.xpose.msra.mxu0 0.0
    %197 = vmatprep.subr.mxu0 0.0
    %198 = vmatpush1.xpose.msra.mxu0 0.0
    %199 = vmatprep.subr.mxu0 0.0
    %200 = vmatpush1.xpose.msra.mxu0 0.0
    %201 = vmatprep.subr.mxu0 0.0
    %202 = vmatpush1.xpose.msra.mxu0 0.0
    %203 = vmatprep.subr.mxu0 0.0
    %204 = vmatpush1.xpose.msra.mxu0 0.0
    %205 = vmatprep.subr.mxu0 0.0
    %206 = vmatpush1.xpose.msra.mxu0 0.0
    %207 = vmatprep.subr.mxu0 0.0
    %208 = vmatpush1.xpose.msra.mxu0 0.0
    %209 = vmatprep.subr.mxu0 0.0
    %210 = vmatpush1.xpose.msra.mxu0 0.0
    %211 = vmatprep.subr.mxu0 0.0
    %212 = vmatpush1.xpose.msra.mxu0 0.0
    %213 = vmatprep.subr.mxu0 0.0
    %214 = vmatpush1.xpose.msra.mxu0 0.0
    %215 = vmatprep.subr.mxu0 0.0
    %216 = vmatpush1.xpose.msra.mxu0 0.0
    %217 = vmatprep.subr.mxu0 0.0
    %218 = vmatpush1.xpose.msra.mxu0 0.0
    %219 = vmatprep.subr.mxu0 0.0
    %220 = vmatpush1.xpose.msra.mxu0 0.0
    %221 = vmatprep.subr.mxu0 0.0
    %222 = vmatpush1.xpose.msra.mxu0 0.0
    %223 = vmatprep.subr.mxu0 0.0
    %224 = vmatpush1.xpose.msra.mxu0 0.0
    %225 = vmatprep.subr.mxu0 0.0
    %226 = vmatpush1.xpose.msra.mxu0 0.0
    %227 = vmatprep.subr.mxu0 0.0
    %228 = vmatpush1.xpose.msra.mxu0 0.0
    %229 = vmatprep.subr.mxu0 0.0
    %230 = vmatpush1.xpose.msra.mxu0 0.0
    %231 = vmatprep.subr.mxu0 0.0
    %232 = vmatpush1.xpose.msra.mxu0 0.0
    %233 = vmatprep.subr.mxu0 0.0
    %234 = vmatpush1.xpose.msra.mxu0 0.0
    %235 = vmatprep.subr.mxu0 0.0
    %236 = vmatpush1.xpose.msra.mxu0 0.0
    %237 = vmatprep.subr.mxu0 0.0
    %238 = vmatpush1.xpose.msra.mxu0 0.0
    %239 = vmatprep.subr.mxu0 0.0
    %240 = vmatpush1.xpose.msra.mxu0 0.0
    %241 = vmatprep.subr.mxu0 0.0
    %242 = vmatpush1.xpose.msra.mxu0 0.0
    %243 = vmatprep.subr.mxu0 0.0
    %244 = vmatpush1.xpose.msra.mxu0 0.0
    %245 = vmatprep.subr.mxu0 0.0
    %246 = vmatpush1.xpose.msra.mxu0 0.0
    %247 = vmatprep.mubr.f32.mxu0 0.0
    %v248 = vand.u32 %v58, 4294901760
    %249 = vmatmul.mubr.f32.gmra.mrb[0].mxu0 %v248
    %v250 = vpop.f32.mrb[0].mxu0
    %v251 = vadd.f32 %v145, %v250
    %v252 = vpop.f32.mrb[0].mxu0
    %253 = vmatprep.mubr.f32.mxu0 0.0
    %v254 = vand.u32 %v61, 4294901760
    %255 = vmatmul.mubr.f32.gmra.mrb[0].mxu0 %v254
    %v256 = vpop.f32.mrb[0].mxu0
    %v257 = vadd.f32 %v155, %v256
    %v258 = vpop.f32.mrb[0].mxu0
    %259 = vmatprep.mubr.f32.mxu0 0.0
    %v260 = vand.u32 %v64, 4294901760
    %261 = vmatmul.mubr.f32.gmra.mrb[0].mxu0 %v260
    %v262 = vpop.f32.mrb[0].mxu0
    %v263 = vadd.f32 %v165, %v262
    %v264 = vpop.f32.mrb[0].mxu0
    %265 = vmatprep.mubr.f32.mxu0 0.0
    %v266 = vand.u32 %v67, 4294901760
    %267 = vmatmul.mubr.f32.gmra.mrb[0].mxu0 %v266
    %v268 = vpop.f32.mrb[0].mxu0
    %v269 = vadd.f32 %v175, %v268
    %v270 = vpop.f32.mrb[0].mxu0
    %271 = vdwg.mxu0
    %272 = vmatprep.subr.mxu0 0.0
    %v273 = vand.u32 %v70, 4294901760
    %v274 = vsub.f32 %v70, %v273
    %275 = vmatpush1.xpose.msra.mxu0 %v274
    %276 = vmatprep.subr.mxu0 0.0
    %277 = vmatpush1.xpose.msra.mxu0 0.0
    %278 = vmatprep.subr.mxu0 0.0
    %279 = vmatpush1.xpose.msra.mxu0 0.0
    %280 = vmatprep.subr.mxu0 0.0
    %281 = vmatpush1.xpose.msra.mxu0 0.0
    %282 = vmatprep.subr.mxu0 0.0
    %283 = vmatpush1.xpose.msra.mxu0 0.0
    %284 = vmatprep.subr.mxu0 0.0
    %285 = vmatpush1.xpose.msra.mxu0 0.0
    %286 = vmatprep.subr.mxu0 0.0
    %287 = vmatpush1.xpose.msra.mxu0 0.0
    %288 = vmatprep.subr.mxu0 0.0
    %289 = vmatpush1.xpose.msra.mxu0 0.0
    %290 = vmatprep.subr.mxu0 0.0
    %291 = vmatpush1.xpose.msra.mxu0 0.0
    %292 = vmatprep.subr.mxu0 0.0
    %293 = vmatpush1.xpose.msra.mxu0 0.0
    %294 = vmatprep.subr.mxu0 0.0
    %295 = vmatpush1.xpose.msra.mxu0 0.0
    %296 = vmatprep.subr.mxu0 0.0
    %297 = vmatpush1.xpose.msra.mxu0 0.0
    %298 = vmatprep.subr.mxu0 0.0
    %299 = vmatpush1.xpose.msra.mxu0 0.0
    %300 = vmatprep.subr.mxu0 0.0
    %301 = vmatpush1.xpose.msra.mxu0 0.0
    %302 = vmatprep.subr.mxu0 0.0
    %303 = vmatpush1.xpose.msra.mxu0 0.0
    %304 = vmatprep.subr.mxu0 0.0
    %305 = vmatpush1.xpose.msra.mxu0 0.0
    %306 = vmatprep.subr.mxu0 0.0
    %307 = vmatpush1.xpose.msra.mxu0 0.0
    %308 = vmatprep.subr.mxu0 0.0
    %309 = vmatpush1.xpose.msra.mxu0 0.0
    %310 = vmatprep.subr.mxu0 0.0
    %311 = vmatpush1.xpose.msra.mxu0 0.0
    %312 = vmatprep.subr.mxu0 0.0
    %313 = vmatpush1.xpose.msra.mxu0 0.0
    %314 = vmatprep.subr.mxu0 0.0
    %315 = vmatpush1.xpose.msra.mxu0 0.0
    %316 = vmatprep.subr.mxu0 0.0
    %317 = vmatpush1.xpose.msra.mxu0 0.0
    %318 = vmatprep.subr.mxu0 0.0
    %319 = vmatpush1.xpose.msra.mxu0 0.0
    %320 = vmatprep.subr.mxu0 0.0
    %321 = vmatpush1.xpose.msra.mxu0 0.0
    %322 = vmatprep.subr.mxu0 0.0
    %323 = vmatpush1.xpose.msra.mxu0 0.0
    %324 = vmatprep.subr.mxu0 0.0
    %325 = vmatpush1.xpose.msra.mxu0 0.0
    %326 = vmatprep.subr.mxu0 0.0
    %327 = vmatpush1.xpose.msra.mxu0 0.0
    %328 = vmatprep.subr.mxu0 0.0
    %329 = vmatpush1.xpose.msra.mxu0 0.0
    %330 = vmatprep.subr.mxu0 0.0
    %331 = vmatpush1.xpose.msra.mxu0 0.0
    %332 = vmatprep.subr.mxu0 0.0
    %333 = vmatpush1.xpose.msra.mxu0 0.0
    %334 = vmatprep.subr.mxu0 0.0
    %335 = vmatpush1.xpose.msra.mxu0 0.0
    %336 = vmatprep.subr.mxu0 0.0
    %337 = vmatpush1.xpose.msra.mxu0 0.0
    %338 = vmatprep.mubr.f32.mxu0 0.0
    %v339 = vand.u32 %v58, 4294901760
    %v340 = vsub.f32 %v58, %v339
    %341 = vmatmul.mubr.f32.gmra.mrb[0].mxu0 %v340
    %v342 = vpop.f32.mrb[0].mxu0
    %v343 = vadd.f32 %v251, %v342
    %v344 = vpop.f32.mrb[0].mxu0
    %345 = vmatprep.mubr.f32.mxu0 0.0
    %v346 = vand.u32 %v61, 4294901760
    %v347 = vsub.f32 %v61, %v346
    %348 = vmatmul.mubr.f32.gmra.mrb[0].mxu0 %v347
    %v349 = vpop.f32.mrb[0].mxu0
    %v350 = vadd.f32 %v257, %v349
    %v351 = vpop.f32.mrb[0].mxu0
    %352 = vmatprep.mubr.f32.mxu0 0.0
    %v353 = vand.u32 %v64, 4294901760
    %v354 = vsub.f32 %v64, %v353
    %355 = vmatmul.mubr.f32.gmra.mrb[0].mxu0 %v354
    %v356 = vpop.f32.mrb[0].mxu0
    %v357 = vadd.f32 %v263, %v356
    %v358 = vpop.f32.mrb[0].mxu0
    %359 = vmatprep.mubr.f32.mxu0 0.0
    %v360 = vand.u32 %v67, 4294901760
    %v361 = vsub.f32 %v67, %v360
    %362 = vmatmul.mubr.f32.gmra.mrb[0].mxu0 %v361
    %v363 = vpop.f32.mrb[0].mxu0
    %v364 = vadd.f32 %v269, %v363
    %v365 = vpop.f32.mrb[0].mxu0
    %366 = vdwg.mxu0
    %367 = vmatprep.subr.mxu0 0.0
    %v368 = vand.u32 %v70, 4294901760
    %369 = vmatpush1.xpose.msra.mxu0 %v368
    %370 = vmatprep.subr.mxu0 0.0
    %371 = vmatpush1.xpose.msra.mxu0 0.0
    %372 = vmatprep.subr.mxu0 0.0
    %373 = vmatpush1.xpose.msra.mxu0 0.0
    %374 = vmatprep.subr.mxu0 0.0
    %375 = vmatpush1.xpose.msra.mxu0 0.0
    %376 = vmatprep.subr.mxu0 0.0
    %377 = vmatpush1.xpose.msra.mxu0 0.0
    %378 = vmatprep.subr.mxu0 0.0
    %379 = vmatpush1.xpose.msra.mxu0 0.0
    %380 = vmatprep.subr.mxu0 0.0
    %381 = vmatpush1.xpose.msra.mxu0 0.0
    %382 = vmatprep.subr.mxu0 0.0
    %383 = vmatpush1.xpose.msra.mxu0 0.0
    %384 = vmatprep.subr.mxu0 0.0
    %385 = vmatpush1.xpose.msra.mxu0 0.0
    %386 = vmatprep.subr.mxu0 0.0
    %387 = vmatpush1.xpose.msra.mxu0 0.0
    %388 = vmatprep.subr.mxu0 0.0
    %389 = vmatpush1.xpose.msra.mxu0 0.0
    %390 = vmatprep.subr.mxu0 0.0
    %391 = vmatpush1.xpose.msra.mxu0 0.0
    %392 = vmatprep.subr.mxu0 0.0
    %393 = vmatpush1.xpose.msra.mxu0 0.0
    %394 = vmatprep.subr.mxu0 0.0
    %395 = vmatpush1.xpose.msra.mxu0 0.0
    %396 = vmatprep.subr.mxu0 0.0
    %397 = vmatpush1.xpose.msra.mxu0 0.0
    %398 = vmatprep.subr.mxu0 0.0
    %399 = vmatpush1.xpose.msra.mxu0 0.0
    %400 = vmatprep.subr.mxu0 0.0
    %401 = vmatpush1.xpose.msra.mxu0 0.0
    %402 = vmatprep.subr.mxu0 0.0
    %403 = vmatpush1.xpose.msra.mxu0 0.0
    %404 = vmatprep.subr.mxu0 0.0
    %405 = vmatpush1.xpose.msra.mxu0 0.0
    %406 = vmatprep.subr.mxu0 0.0
    %407 = vmatpush1.xpose.msra.mxu0 0.0
    %408 = vmatprep.subr.mxu0 0.0
    %409 = vmatpush1.xpose.msra.mxu0 0.0
    %410 = vmatprep.subr.mxu0 0.0
    %411 = vmatpush1.xpose.msra.mxu0 0.0
    %412 = vmatprep.subr.mxu0 0.0
    %413 = vmatpush1.xpose.msra.mxu0 0.0
    %414 = vmatprep.subr.mxu0 0.0
    %415 = vmatpush1.xpose.msra.mxu0 0.0
    %416 = vmatprep.subr.mxu0 0.0
    %417 = vmatpush1.xpose.msra.mxu0 0.0
    %418 = vmatprep.subr.mxu0 0.0
    %419 = vmatpush1.xpose.msra.mxu0 0.0
    %420 = vmatprep.subr.mxu0 0.0
    %421 = vmatpush1.xpose.msra.mxu0 0.0
    %422 = vmatprep.subr.mxu0 0.0
    %423 = vmatpush1.xpose.msra.mxu0 0.0
    %424 = vmatprep.subr.mxu0 0.0
    %425 = vmatpush1.xpose.msra.mxu0 0.0
    %426 = vmatprep.subr.mxu0 0.0
    %427 = vmatpush1.xpose.msra.mxu0 0.0
    %428 = vmatprep.subr.mxu0 0.0
    %429 = vmatpush1.xpose.msra.mxu0 0.0
    %430 = vmatprep.subr.mxu0 0.0
    %431 = vmatpush1.xpose.msra.mxu0 0.0
    %432 = vmatprep.mubr.f32.mxu0 0.0
    %v433 = vand.u32 %v58, 4294901760
    %v434 = vsub.f32 %v58, %v433
    %v435 = vand.u32 %v434, 4294901760
    %436 = vmatmul.mubr.f32.gmra.mrb[0].mxu0 %v435
    %v437 = vpop.f32.mrb[0].mxu0
    %v438 = vadd.f32 %v343, %v437
    %v439 = vpop.f32.mrb[0].mxu0
    %440 = vmatprep.mubr.f32.mxu0 0.0
    %v441 = vand.u32 %v61, 4294901760
    %v442 = vsub.f32 %v61, %v441
    %v443 = vand.u32 %v442, 4294901760
    %444 = vmatmul.mubr.f32.gmra.mrb[0].mxu0 %v443
    %v445 = vpop.f32.mrb[0].mxu0
    %v446 = vadd.f32 %v350, %v445
    %v447 = vpop.f32.mrb[0].mxu0
    %448 = vmatprep.mubr.f32.mxu0 0.0
    %v449 = vand.u32 %v64, 4294901760
    %v450 = vsub.f32 %v64, %v449
    %v451 = vand.u32 %v450, 4294901760
    %452 = vmatmul.mubr.f32.gmra.mrb[0].mxu0 %v451
    %v453 = vpop.f32.mrb[0].mxu0
    %v454 = vadd.f32 %v357, %v453
    %v455 = vpop.f32.mrb[0].mxu0
    %456 = vmatprep.mubr.f32.mxu0 0.0
    %v457 = vand.u32 %v67, 4294901760
    %v458 = vsub.f32 %v67, %v457
    %v459 = vand.u32 %v458, 4294901760
    %460 = vmatmul.mubr.f32.gmra.mrb[0].mxu0 %v459
    %v461 = vpop.f32.mrb[0].mxu0
    %v462 = vadd.f32 %v364, %v461
    %v463 = vpop.f32.mrb[0].mxu0
    %464 = vdwg.mxu0
    %465 = vmatprep.subr.mxu0 0.0
    %v466 = vand.u32 %v70, 4294901760
    %v467 = vsub.f32 %v70, %v466
    %v468 = vand.u32 %v467, 4294901760
    %469 = vmatpush1.xpose.msra.mxu0 %v468
    %470 = vmatprep.subr.mxu0 0.0
    %471 = vmatpush1.xpose.msra.mxu0 0.0
    %472 = vmatprep.subr.mxu0 0.0
    %473 = vmatpush1.xpose.msra.mxu0 0.0
    %474 = vmatprep.subr.mxu0 0.0
    %475 = vmatpush1.xpose.msra.mxu0 0.0
    %476 = vmatprep.subr.mxu0 0.0
    %477 = vmatpush1.xpose.msra.mxu0 0.0
    %478 = vmatprep.subr.mxu0 0.0
    %479 = vmatpush1.xpose.msra.mxu0 0.0
    %480 = vmatprep.subr.mxu0 0.0
    %481 = vmatpush1.xpose.msra.mxu0 0.0
    %482 = vmatprep.subr.mxu0 0.0
    %483 = vmatpush1.xpose.msra.mxu0 0.0
    %484 = vmatprep.subr.mxu0 0.0
    %485 = vmatpush1.xpose.msra.mxu0 0.0
    %486 = vmatprep.subr.mxu0 0.0
    %487 = vmatpush1.xpose.msra.mxu0 0.0
    %488 = vmatprep.subr.mxu0 0.0
    %489 = vmatpush1.xpose.msra.mxu0 0.0
    %490 = vmatprep.subr.mxu0 0.0
    %491 = vmatpush1.xpose.msra.mxu0 0.0
    %492 = vmatprep.subr.mxu0 0.0
    %493 = vmatpush1.xpose.msra.mxu0 0.0
    %494 = vmatprep.subr.mxu0 0.0
    %495 = vmatpush1.xpose.msra.mxu0 0.0
    %496 = vmatprep.subr.mxu0 0.0
    %497 = vmatpush1.xpose.msra.mxu0 0.0
    %498 = vmatprep.subr.mxu0 0.0
    %499 = vmatpush1.xpose.msra.mxu0 0.0
    %500 = vmatprep.subr.mxu0 0.0
    %501 = vmatpush1.xpose.msra.mxu0 0.0
    %502 = vmatprep.subr.mxu0 0.0
    %503 = vmatpush1.xpose.msra.mxu0 0.0
    %504 = vmatprep.subr.mxu0 0.0
    %505 = vmatpush1.xpose.msra.mxu0 0.0
    %506 = vmatprep.subr.mxu0 0.0
    %507 = vmatpush1.xpose.msra.mxu0 0.0
    %508 = vmatprep.subr.mxu0 0.0
    %509 = vmatpush1.xpose.msra.mxu0 0.0
    %510 = vmatprep.subr.mxu0 0.0
    %511 = vmatpush1.xpose.msra.mxu0 0.0
    %512 = vmatprep.subr.mxu0 0.0
    %513 = vmatpush1.xpose.msra.mxu0 0.0
    %514 = vmatprep.subr.mxu0 0.0
    %515 = vmatpush1.xpose.msra.mxu0 0.0
    %516 = vmatprep.subr.mxu0 0.0
    %517 = vmatpush1.xpose.msra.mxu0 0.0
    %518 = vmatprep.subr.mxu0 0.0
    %519 = vmatpush1.xpose.msra.mxu0 0.0
    %520 = vmatprep.subr.mxu0 0.0
    %521 = vmatpush1.xpose.msra.mxu0 0.0
    %522 = vmatprep.subr.mxu0 0.0
    %523 = vmatpush1.xpose.msra.mxu0 0.0
    %524 = vmatprep.subr.mxu0 0.0
    %525 = vmatpush1.xpose.msra.mxu0 0.0
    %526 = vmatprep.subr.mxu0 0.0
    %527 = vmatpush1.xpose.msra.mxu0 0.0
    %528 = vmatprep.subr.mxu0 0.0
    %529 = vmatpush1.xpose.msra.mxu0 0.0
    %530 = vmatprep.subr.mxu0 0.0
    %531 = vmatpush1.xpose.msra.mxu0 0.0
    %532 = vmatprep.mubr.f32.mxu0 0.0
    %v533 = vand.u32 %v58, 4294901760
    %534 = vmatmul.mubr.f32.gmra.mrb[0].mxu0 %v533
    %v535 = vpop.f32.mrb[0].mxu0
    %v536 = vadd.f32 %v438, %v535
    %v537 = vpop.f32.mrb[0].mxu0
    %538 = vmatprep.mubr.f32.mxu0 0.0
    %v539 = vand.u32 %v61, 4294901760
    %540 = vmatmul.mubr.f32.gmra.mrb[0].mxu0 %v539
    %v541 = vpop.f32.mrb[0].mxu0
    %v542 = vadd.f32 %v446, %v541
    %v543 = vpop.f32.mrb[0].mxu0
    %544 = vmatprep.mubr.f32.mxu0 0.0
    %v545 = vand.u32 %v64, 4294901760
    %546 = vmatmul.mubr.f32.gmra.mrb[0].mxu0 %v545
    %v547 = vpop.f32.mrb[0].mxu0
    %v548 = vadd.f32 %v454, %v547
    %v549 = vpop.f32.mrb[0].mxu0
    %550 = vmatprep.mubr.f32.mxu0 0.0
    %v551 = vand.u32 %v67, 4294901760
    %552 = vmatmul.mubr.f32.gmra.mrb[0].mxu0 %v551
    %v553 = vpop.f32.mrb[0].mxu0
    %v554 = vadd.f32 %v462, %v553
    %v555 = vpop.f32.mrb[0].mxu0
    %556 = vdwg.mxu0
    %557 = vmatprep.subr.mxu0 0.0
    %v558 = vand.u32 %v70, 4294901760
    %559 = vmatpush1.xpose.msra.mxu0 %v558
    %560 = vmatprep.subr.mxu0 0.0
    %561 = vmatpush1.xpose.msra.mxu0 0.0
    %562 = vmatprep.subr.mxu0 0.0
    %563 = vmatpush1.xpose.msra.mxu0 0.0
    %564 = vmatprep.subr.mxu0 0.0
    %565 = vmatpush1.xpose.msra.mxu0 0.0
    %566 = vmatprep.subr.mxu0 0.0
    %567 = vmatpush1.xpose.msra.mxu0 0.0
    %568 = vmatprep.subr.mxu0 0.0
    %569 = vmatpush1.xpose.msra.mxu0 0.0
    %570 = vmatprep.subr.mxu0 0.0
    %571 = vmatpush1.xpose.msra.mxu0 0.0
    %572 = vmatprep.subr.mxu0 0.0
    %573 = vmatpush1.xpose.msra.mxu0 0.0
    %574 = vmatprep.subr.mxu0 0.0
    %575 = vmatpush1.xpose.msra.mxu0 0.0
    %576 = vmatprep.subr.mxu0 0.0
    %577 = vmatpush1.xpose.msra.mxu0 0.0
    %578 = vmatprep.subr.mxu0 0.0
    %579 = vmatpush1.xpose.msra.mxu0 0.0
    %580 = vmatprep.subr.mxu0 0.0
    %581 = vmatpush1.xpose.msra.mxu0 0.0
    %582 = vmatprep.subr.mxu0 0.0
    %583 = vmatpush1.xpose.msra.mxu0 0.0
    %584 = vmatprep.subr.mxu0 0.0
    %585 = vmatpush1.xpose.msra.mxu0 0.0
    %586 = vmatprep.subr.mxu0 0.0
    %587 = vmatpush1.xpose.msra.mxu0 0.0
    %588 = vmatprep.subr.mxu0 0.0
    %589 = vmatpush1.xpose.msra.mxu0 0.0
    %590 = vmatprep.subr.mxu0 0.0
    %591 = vmatpush1.xpose.msra.mxu0 0.0
    %592 = vmatprep.subr.mxu0 0.0
    %593 = vmatpush1.xpose.msra.mxu0 0.0
    %594 = vmatprep.subr.mxu0 0.0
    %595 = vmatpush1.xpose.msra.mxu0 0.0
    %596 = vmatprep.subr.mxu0 0.0
    %597 = vmatpush1.xpose.msra.mxu0 0.0
    %598 = vmatprep.subr.mxu0 0.0
    %599 = vmatpush1.xpose.msra.mxu0 0.0
    %600 = vmatprep.subr.mxu0 0.0
    %601 = vmatpush1.xpose.msra.mxu0 0.0
    %602 = vmatprep.subr.mxu0 0.0
    %603 = vmatpush1.xpose.msra.mxu0 0.0
    %604 = vmatprep.subr.mxu0 0.0
    %605 = vmatpush1.xpose.msra.mxu0 0.0
    %606 = vmatprep.subr.mxu0 0.0
    %607 = vmatpush1.xpose.msra.mxu0 0.0
    %608 = vmatprep.subr.mxu0 0.0
    %609 = vmatpush1.xpose.msra.mxu0 0.0
    %610 = vmatprep.subr.mxu0 0.0
    %611 = vmatpush1.xpose.msra.mxu0 0.0
    %612 = vmatprep.subr.mxu0 0.0
    %613 = vmatpush1.xpose.msra.mxu0 0.0
    %614 = vmatprep.subr.mxu0 0.0
    %615 = vmatpush1.xpose.msra.mxu0 0.0
    %616 = vmatprep.subr.mxu0 0.0
    %617 = vmatpush1.xpose.msra.mxu0 0.0
    %618 = vmatprep.subr.mxu0 0.0
    %619 = vmatpush1.xpose.msra.mxu0 0.0
    %620 = vmatprep.subr.mxu0 0.0
    %621 = vmatpush1.xpose.msra.mxu0 0.0
    %622 = vmatprep.mubr.f32.mxu0 0.0
    %v623 = vand.u32 %v58, 4294901760
    %624 = vmatmul.mubr.f32.gmra.mrb[0].mxu0 %v623
    %v625 = vpop.f32.mrb[0].mxu0
    %v626 = vadd.f32 %v536, %v625
    %v627 = vpop.f32.mrb[0].mxu0
    %628 = vmatprep.mubr.f32.mxu0 0.0
    %v629 = vand.u32 %v61, 4294901760
    %630 = vmatmul.mubr.f32.gmra.mrb[0].mxu0 %v629
    %v631 = vpop.f32.mrb[0].mxu0
    %v632 = vadd.f32 %v542, %v631
    %v633 = vpop.f32.mrb[0].mxu0
    %634 = vmatprep.mubr.f32.mxu0 0.0
    %v635 = vand.u32 %v64, 4294901760
    %636 = vmatmul.mubr.f32.gmra.mrb[0].mxu0 %v635
    %v637 = vpop.f32.mrb[0].mxu0
    %v638 = vadd.f32 %v548, %v637
    %v639 = vpop.f32.mrb[0].mxu0
    %640 = vmatprep.mubr.f32.mxu0 0.0
    %v641 = vand.u32 %v67, 4294901760
    %642 = vmatmul.mubr.f32.gmra.mrb[0].mxu0 %v641
    %v643 = vpop.f32.mrb[0].mxu0
    %v644 = vadd.f32 %v554, %v643
    %v645 = vpop.f32.mrb[0].mxu0
    %646 = vdwg.mxu0
    %v647 = vmul.f32 %v626, 0.01
    %v648 = vmul.f32 %v632, 0.01
    %v649 = vmul.f32 %v638, 0.01
    %v650 = vmul.f32 %v644, 0.01
    %v651 = vmax.f32 %v626, %v647
    %v652 = vmax.f32 %v632, %v648
    %v653 = vmax.f32 %v638, %v649
    %v654 = vmax.f32 %v644, %v650
    %v655 = vld [vmem:[%s3] sm:$0xff]
    %v656 = vld [vmem:[%s3 + $0x8] sm:$0xff]
    %v657 = vld [vmem:[%s3 + $0x10] sm:$0xff]
    %v658 = vld [vmem:[%s3 + $0x18] sm:$0xff]
    %v659 = vld [vmem:[%s4] sm:$0xff]
    %v660 = vld [vmem:[%s4 + $0x8] sm:$0xff]
    %v661 = vld [vmem:[%s4 + $0x10] sm:$0xff]
    %v662 = vld [vmem:[%s4 + $0x18] sm:$0xff]
    %664 = vset.pattern.permute.xlu0 0
    %665 = vperm.xlu0 %664, %v659
    %v666 = vpop.permute.xlu0 %665
    %669 = vset.pattern.permute.xlu0 0
    %670 = vperm.xlu0 %669, %v660
    %v671 = vpop.permute.xlu0 %670
    %674 = vset.pattern.permute.xlu0 0
    %675 = vperm.xlu0 %674, %v661
    %v676 = vpop.permute.xlu0 %675
    %679 = vset.pattern.permute.xlu0 0
    %680 = vperm.xlu0 %679, %v662
    %v681 = vpop.permute.xlu0 %680
    %vm683 = vcmask 261120
    %v685 = vsel %vm683, %v655, 0
    %v688 = vsel %vm683, %v656, 0
    %v691 = vsel %vm683, %v657, 0
    %v694 = vsel %vm683, %v658, 0
    %696 = vmatprep.subr.mxu0 0.0
    %v697 = vand.u32 %v651, 4294901760
    %698 = vmatpush1.msra.mxu0 %v697
    %699 = vmatprep.subr.mxu0 0.0
    %v700 = vand.u32 %v652, 4294901760
    %701 = vmatpush1.msra.mxu0 %v700
    %702 = vmatprep.subr.mxu0 0.0
    %v703 = vand.u32 %v653, 4294901760
    %704 = vmatpush1.msra.mxu0 %v703
    %705 = vmatprep.subr.mxu0 0.0
    %v706 = vand.u32 %v654, 4294901760
    %707 = vmatpush1.msra.mxu0 %v706
    %708 = vmatprep.subr.mxu0 0.0
    %709 = vmatpush1.msra.mxu0 0.0
    %710 = vmatprep.subr.mxu0 0.0
    %711 = vmatpush1.msra.mxu0 0.0
    %712 = vmatprep.subr.mxu0 0.0
    %713 = vmatpush1.msra.mxu0 0.0
    %714 = vmatprep.subr.mxu0 0.0
    %715 = vmatpush1.msra.mxu0 0.0
    %716 = vmatprep.subr.mxu0 0.0
    %717 = vmatpush1.msra.mxu0 0.0
    %718 = vmatprep.subr.mxu0 0.0
    %719 = vmatpush1.msra.mxu0 0.0
    %720 = vmatprep.subr.mxu0 0.0
    %721 = vmatpush1.msra.mxu0 0.0
    %722 = vmatprep.subr.mxu0 0.0
    %723 = vmatpush1.msra.mxu0 0.0
    %724 = vmatprep.subr.mxu0 0.0
    %725 = vmatpush1.msra.mxu0 0.0
    %726 = vmatprep.subr.mxu0 0.0
    %727 = vmatpush1.msra.mxu0 0.0
    %728 = vmatprep.subr.mxu0 0.0
    %729 = vmatpush1.msra.mxu0 0.0
    %730 = vmatprep.subr.mxu0 0.0
    %731 = vmatpush1.msra.mxu0 0.0
    %732 = vmatprep.subr.mxu0 0.0
    %733 = vmatpush1.msra.mxu0 0.0
    %734 = vmatprep.subr.mxu0 0.0
    %735 = vmatpush1.msra.mxu0 0.0
    %736 = vmatprep.subr.mxu0 0.0
    %737 = vmatpush1.msra.mxu0 0.0
    %738 = vmatprep.subr.mxu0 0.0
    %739 = vmatpush1.msra.mxu0 0.0
    %740 = vmatprep.subr.mxu0 0.0
    %741 = vmatpush1.msra.mxu0 0.0
    %742 = vmatprep.subr.mxu0 0.0
    %743 = vmatpush1.msra.mxu0 0.0
    %744 = vmatprep.subr.mxu0 0.0
    %745 = vmatpush1.msra.mxu0 0.0
    %746 = vmatprep.subr.mxu0 0.0
    %747 = vmatpush1.msra.mxu0 0.0
    %748 = vmatprep.subr.mxu0 0.0
    %749 = vmatpush1.msra.mxu0 0.0
    %750 = vmatprep.subr.mxu0 0.0
    %751 = vmatpush1.msra.mxu0 0.0
    %752 = vmatprep.subr.mxu0 0.0
    %753 = vmatpush1.msra.mxu0 0.0
    %754 = vmatprep.subr.mxu0 0.0
    %755 = vmatpush1.msra.mxu0 0.0
    %756 = vmatprep.subr.mxu0 0.0
    %757 = vmatpush1.msra.mxu0 0.0
    %758 = vmatprep.subr.mxu0 0.0
    %759 = vmatpush1.msra.mxu0 0.0
    %760 = vmatprep.subr.mxu0 0.0
    %761 = vmatpush1.msra.mxu0 0.0
    %762 = vmatprep.subr.mxu0 0.0
    %763 = vmatpush1.msra.mxu0 0.0
    %764 = vmatprep.mubr.f32.mxu0 0.0
    %v765 = vand.u32 %v685, 4294901760
    %v766 = vsub.f32 %v685, %v765
    %v767 = vand.u32 %v766, 4294901760
    %v768 = vsub.f32 %v766, %v767
    %v769 = vand.u32 %v768, 4294901760
    %770 = vmatmul.mubr.f32.gmra.mrb[0].mxu0 %v769
    %v771 = vpop.f32.mrb[0].mxu0
    %v772 = vadd.f32 %v666, %v771
    %v773 = vpop.f32.mrb[0].mxu0
    %774 = vmatprep.mubr.f32.mxu0 0.0
    %v775 = vand.u32 %v688, 4294901760
    %v776 = vsub.f32 %v688, %v775
    %v777 = vand.u32 %v776, 4294901760
    %v778 = vsub.f32 %v776, %v777
    %v779 = vand.u32 %v778, 4294901760
    %780 = vmatmul.mubr.f32.gmra.mrb[0].mxu0 %v779
    %v781 = vpop.f32.mrb[0].mxu0
    %v782 = vadd.f32 %v671, %v781
    %v783 = vpop.f32.mrb[0].mxu0
    %784 = vmatprep.mubr.f32.mxu0 0.0
    %v785 = vand.u32 %v691, 4294901760
    %v786 = vsub.f32 %v691, %v785
    %v787 = vand.u32 %v786, 4294901760
    %v788 = vsub.f32 %v786, %v787
    %v789 = vand.u32 %v788, 4294901760
    %790 = vmatmul.mubr.f32.gmra.mrb[0].mxu0 %v789
    %v791 = vpop.f32.mrb[0].mxu0
    %v792 = vadd.f32 %v676, %v791
    %v793 = vpop.f32.mrb[0].mxu0
    %794 = vmatprep.mubr.f32.mxu0 0.0
    %v795 = vand.u32 %v694, 4294901760
    %v796 = vsub.f32 %v694, %v795
    %v797 = vand.u32 %v796, 4294901760
    %v798 = vsub.f32 %v796, %v797
    %v799 = vand.u32 %v798, 4294901760
    %800 = vmatmul.mubr.f32.gmra.mrb[0].mxu0 %v799
    %v801 = vpop.f32.mrb[0].mxu0
    %v802 = vadd.f32 %v681, %v801
    %v803 = vpop.f32.mrb[0].mxu0
    %804 = vdwg.mxu0
    %805 = vmatprep.subr.mxu0 0.0
    %v806 = vand.u32 %v651, 4294901760
    %v807 = vsub.f32 %v651, %v806
    %v808 = vand.u32 %v807, 4294901760
    %v809 = vsub.f32 %v807, %v808
    %v810 = vand.u32 %v809, 4294901760
    %811 = vmatpush1.msra.mxu0 %v810
    %812 = vmatprep.subr.mxu0 0.0
    %v813 = vand.u32 %v652, 4294901760
    %v814 = vsub.f32 %v652, %v813
    %v815 = vand.u32 %v814, 4294901760
    %v816 = vsub.f32 %v814, %v815
    %v817 = vand.u32 %v816, 4294901760
    %818 = vmatpush1.msra.mxu0 %v817
    %819 = vmatprep.subr.mxu0 0.0
    %v820 = vand.u32 %v653, 4294901760
    %v821 = vsub.f32 %v653, %v820
    %v822 = vand.u32 %v821, 4294901760
    %v823 = vsub.f32 %v821, %v822
    %v824 = vand.u32 %v823, 4294901760
    %825 = vmatpush1.msra.mxu0 %v824
    %826 = vmatprep.subr.mxu0 0.0
    %v827 = vand.u32 %v654, 4294901760
    %v828 = vsub.f32 %v654, %v827
    %v829 = vand.u32 %v828, 4294901760
    %v830 = vsub.f32 %v828, %v829
    %v831 = vand.u32 %v830, 4294901760
    %832 = vmatpush1.msra.mxu0 %v831
    %833 = vmatprep.subr.mxu0 0.0
    %834 = vmatpush1.msra.mxu0 0.0
    %835 = vmatprep.subr.mxu0 0.0
    %836 = vmatpush1.msra.mxu0 0.0
    %837 = vmatprep.subr.mxu0 0.0
    %838 = vmatpush1.msra.mxu0 0.0
    %839 = vmatprep.subr.mxu0 0.0
    %840 = vmatpush1.msra.mxu0 0.0
    %841 = vmatprep.subr.mxu0 0.0
    %842 = vmatpush1.msra.mxu0 0.0
    %843 = vmatprep.subr.mxu0 0.0
    %844 = vmatpush1.msra.mxu0 0.0
    %845 = vmatprep.subr.mxu0 0.0
    %846 = vmatpush1.msra.mxu0 0.0
    %847 = vmatprep.subr.mxu0 0.0
    %848 = vmatpush1.msra.mxu0 0.0
    %849 = vmatprep.subr.mxu0 0.0
    %850 = vmatpush1.msra.mxu0 0.0
    %851 = vmatprep.subr.mxu0 0.0
    %852 = vmatpush1.msra.mxu0 0.0
    %853 = vmatprep.subr.mxu0 0.0
    %854 = vmatpush1.msra.mxu0 0.0
    %855 = vmatprep.subr.mxu0 0.0
    %856 = vmatpush1.msra.mxu0 0.0
    %857 = vmatprep.subr.mxu0 0.0
    %858 = vmatpush1.msra.mxu0 0.0
    %859 = vmatprep.subr.mxu0 0.0
    %860 = vmatpush1.msra.mxu0 0.0
    %861 = vmatprep.subr.mxu0 0.0
    %862 = vmatpush1.msra.mxu0 0.0
    %863 = vmatprep.subr.mxu0 0.0
    %864 = vmatpush1.msra.mxu0 0.0
    %865 = vmatprep.subr.mxu0 0.0
    %866 = vmatpush1.msra.mxu0 0.0
    %867 = vmatprep.subr.mxu0 0.0
    %868 = vmatpush1.msra.mxu0 0.0
    %869 = vmatprep.subr.mxu0 0.0
    %870 = vmatpush1.msra.mxu0 0.0
    %871 = vmatprep.subr.mxu0 0.0
    %872 = vmatpush1.msra.mxu0 0.0
    %873 = vmatprep.subr.mxu0 0.0
    %874 = vmatpush1.msra.mxu0 0.0
    %875 = vmatprep.subr.mxu0 0.0
    %876 = vmatpush1.msra.mxu0 0.0
    %877 = vmatprep.subr.mxu0 0.0
    %878 = vmatpush1.msra.mxu0 0.0
    %879 = vmatprep.subr.mxu0 0.0
    %880 = vmatpush1.msra.mxu0 0.0
    %881 = vmatprep.subr.mxu0 0.0
    %882 = vmatpush1.msra.mxu0 0.0
    %883 = vmatprep.subr.mxu0 0.0
    %884 = vmatpush1.msra.mxu0 0.0
    %885 = vmatprep.subr.mxu0 0.0
    %886 = vmatpush1.msra.mxu0 0.0
    %887 = vmatprep.subr.mxu0 0.0
    %888 = vmatpush1.msra.mxu0 0.0
    %889 = vmatprep.mubr.f32.mxu0 0.0
    %v890 = vand.u32 %v685, 4294901760
    %891 = vmatmul.mubr.f32.gmra.mrb[0].mxu0 %v890
    %v892 = vpop.f32.mrb[0].mxu0
    %v893 = vadd.f32 %v772, %v892
    %v894 = vpop.f32.mrb[0].mxu0
    %895 = vmatprep.mubr.f32.mxu0 0.0
    %v896 = vand.u32 %v688, 4294901760
    %897 = vmatmul.mubr.f32.gmra.mrb[0].mxu0 %v896
    %v898 = vpop.f32.mrb[0].mxu0
    %v899 = vadd.f32 %v782, %v898
    %v900 = vpop.f32.mrb[0].mxu0
    %901 = vmatprep.mubr.f32.mxu0 0.0
    %v902 = vand.u32 %v691, 4294901760
    %903 = vmatmul.mubr.f32.gmra.mrb[0].mxu0 %v902
    %v904 = vpop.f32.mrb[0].mxu0
    %v905 = vadd.f32 %v792, %v904
    %v906 = vpop.f32.mrb[0].mxu0
    %907 = vmatprep.mubr.f32.mxu0 0.0
    %v908 = vand.u32 %v694, 4294901760
    %909 = vmatmul.mubr.f32.gmra.mrb[0].mxu0 %v908
    %v910 = vpop.f32.mrb[0].mxu0
    %v911 = vadd.f32 %v802, %v910
    %v912 = vpop.f32.mrb[0].mxu0
    %913 = vdwg.mxu0
    %914 = vmatprep.subr.mxu0 0.0
    %v915 = vand.u32 %v651, 4294901760
    %v916 = vsub.f32 %v651, %v915
    %917 = vmatpush1.msra.mxu0 %v916
    %918 = vmatprep.subr.mxu0 0.0
    %v919 = vand.u32 %v652, 4294901760
    %v920 = vsub.f32 %v652, %v919
    %921 = vmatpush1.msra.mxu0 %v920
    %922 = vmatprep.subr.mxu0 0.0
    %v923 = vand.u32 %v653, 4294901760
    %v924 = vsub.f32 %v653, %v923
    %925 = vmatpush1.msra.mxu0 %v924
    %926 = vmatprep.subr.mxu0 0.0
    %v927 = vand.u32 %v654, 4294901760
    %v928 = vsub.f32 %v654, %v927
    %929 = vmatpush1.msra.mxu0 %v928
    %930 = vmatprep.subr.mxu0 0.0
    %931 = vmatpush1.msra.mxu0 0.0
    %932 = vmatprep.subr.mxu0 0.0
    %933 = vmatpush1.msra.mxu0 0.0
    %934 = vmatprep.subr.mxu0 0.0
    %935 = vmatpush1.msra.mxu0 0.0
    %936 = vmatprep.subr.mxu0 0.0
    %937 = vmatpush1.msra.mxu0 0.0
    %938 = vmatprep.subr.mxu0 0.0
    %939 = vmatpush1.msra.mxu0 0.0
    %940 = vmatprep.subr.mxu0 0.0
    %941 = vmatpush1.msra.mxu0 0.0
    %942 = vmatprep.subr.mxu0 0.0
    %943 = vmatpush1.msra.mxu0 0.0
    %944 = vmatprep.subr.mxu0 0.0
    %945 = vmatpush1.msra.mxu0 0.0
    %946 = vmatprep.subr.mxu0 0.0
    %947 = vmatpush1.msra.mxu0 0.0
    %948 = vmatprep.subr.mxu0 0.0
    %949 = vmatpush1.msra.mxu0 0.0
    %950 = vmatprep.subr.mxu0 0.0
    %951 = vmatpush1.msra.mxu0 0.0
    %952 = vmatprep.subr.mxu0 0.0
    %953 = vmatpush1.msra.mxu0 0.0
    %954 = vmatprep.subr.mxu0 0.0
    %955 = vmatpush1.msra.mxu0 0.0
    %956 = vmatprep.subr.mxu0 0.0
    %957 = vmatpush1.msra.mxu0 0.0
    %958 = vmatprep.subr.mxu0 0.0
    %959 = vmatpush1.msra.mxu0 0.0
    %960 = vmatprep.subr.mxu0 0.0
    %961 = vmatpush1.msra.mxu0 0.0
    %962 = vmatprep.subr.mxu0 0.0
    %963 = vmatpush1.msra.mxu0 0.0
    %964 = vmatprep.subr.mxu0 0.0
    %965 = vmatpush1.msra.mxu0 0.0
    %966 = vmatprep.subr.mxu0 0.0
    %967 = vmatpush1.msra.mxu0 0.0
    %968 = vmatprep.subr.mxu0 0.0
    %969 = vmatpush1.msra.mxu0 0.0
    %970 = vmatprep.subr.mxu0 0.0
    %971 = vmatpush1.msra.mxu0 0.0
    %972 = vmatprep.subr.mxu0 0.0
    %973 = vmatpush1.msra.mxu0 0.0
    %974 = vmatprep.subr.mxu0 0.0
    %975 = vmatpush1.msra.mxu0 0.0
    %976 = vmatprep.subr.mxu0 0.0
    %977 = vmatpush1.msra.mxu0 0.0
    %978 = vmatprep.subr.mxu0 0.0
    %979 = vmatpush1.msra.mxu0 0.0
    %980 = vmatprep.subr.mxu0 0.0
    %981 = vmatpush1.msra.mxu0 0.0
    %982 = vmatprep.subr.mxu0 0.0
    %983 = vmatpush1.msra.mxu0 0.0
    %984 = vmatprep.subr.mxu0 0.0
    %985 = vmatpush1.msra.mxu0 0.0
    %986 = vmatprep.mubr.f32.mxu0 0.0
    %v987 = vand.u32 %v685, 4294901760
    %v988 = vsub.f32 %v685, %v987
    %989 = vmatmul.mubr.f32.gmra.mrb[0].mxu0 %v988
    %v990 = vpop.f32.mrb[0].mxu0
    %v991 = vadd.f32 %v893, %v990
    %v992 = vpop.f32.mrb[0].mxu0
    %993 = vmatprep.mubr.f32.mxu0 0.0
    %v994 = vand.u32 %v688, 4294901760
    %v995 = vsub.f32 %v688, %v994
    %996 = vmatmul.mubr.f32.gmra.mrb[0].mxu0 %v995
    %v997 = vpop.f32.mrb[0].mxu0
    %v998 = vadd.f32 %v899, %v997
    %v999 = vpop.f32.mrb[0].mxu0
    %1000 = vmatprep.mubr.f32.mxu0 0.0
    %v1001 = vand.u32 %v691, 4294901760
    %v1002 = vsub.f32 %v691, %v1001
    %1003 = vmatmul.mubr.f32.gmra.mrb[0].mxu0 %v1002
    %v1004 = vpop.f32.mrb[0].mxu0
    %v1005 = vadd.f32 %v905, %v1004
    %v1006 = vpop.f32.mrb[0].mxu0
    %1007 = vmatprep.mubr.f32.mxu0 0.0
    %v1008 = vand.u32 %v694, 4294901760
    %v1009 = vsub.f32 %v694, %v1008
    %1010 = vmatmul.mubr.f32.gmra.mrb[0].mxu0 %v1009
    %v1011 = vpop.f32.mrb[0].mxu0
    %v1012 = vadd.f32 %v911, %v1011
    %v1013 = vpop.f32.mrb[0].mxu0
    %1014 = vdwg.mxu0
    %1015 = vmatprep.subr.mxu0 0.0
    %v1016 = vand.u32 %v651, 4294901760
    %1017 = vmatpush1.msra.mxu0 %v1016
    %1018 = vmatprep.subr.mxu0 0.0
    %v1019 = vand.u32 %v652, 4294901760
    %1020 = vmatpush1.msra.mxu0 %v1019
    %1021 = vmatprep.subr.mxu0 0.0
    %v1022 = vand.u32 %v653, 4294901760
    %1023 = vmatpush1.msra.mxu0 %v1022
    %1024 = vmatprep.subr.mxu0 0.0
    %v1025 = vand.u32 %v654, 4294901760
    %1026 = vmatpush1.msra.mxu0 %v1025
    %1027 = vmatprep.subr.mxu0 0.0
    %1028 = vmatpush1.msra.mxu0 0.0
    %1029 = vmatprep.subr.mxu0 0.0
    %1030 = vmatpush1.msra.mxu0 0.0
    %1031 = vmatprep.subr.mxu0 0.0
    %1032 = vmatpush1.msra.mxu0 0.0
    %1033 = vmatprep.subr.mxu0 0.0
    %1034 = vmatpush1.msra.mxu0 0.0
    %1035 = vmatprep.subr.mxu0 0.0
    %1036 = vmatpush1.msra.mxu0 0.0
    %1037 = vmatprep.subr.mxu0 0.0
    %1038 = vmatpush1.msra.mxu0 0.0
    %1039 = vmatprep.subr.mxu0 0.0
    %1040 = vmatpush1.msra.mxu0 0.0
    %1041 = vmatprep.subr.mxu0 0.0
    %1042 = vmatpush1.msra.mxu0 0.0
    %1043 = vmatprep.subr.mxu0 0.0
    %1044 = vmatpush1.msra.mxu0 0.0
    %1045 = vmatprep.subr.mxu0 0.0
    %1046 = vmatpush1.msra.mxu0 0.0
    %1047 = vmatprep.subr.mxu0 0.0
    %1048 = vmatpush1.msra.mxu0 0.0
    %1049 = vmatprep.subr.mxu0 0.0
    %1050 = vmatpush1.msra.mxu0 0.0
    %1051 = vmatprep.subr.mxu0 0.0
    %1052 = vmatpush1.msra.mxu0 0.0
    %1053 = vmatprep.subr.mxu0 0.0
    %1054 = vmatpush1.msra.mxu0 0.0
    %1055 = vmatprep.subr.mxu0 0.0
    %1056 = vmatpush1.msra.mxu0 0.0
    %1057 = vmatprep.subr.mxu0 0.0
    %1058 = vmatpush1.msra.mxu0 0.0
    %1059 = vmatprep.subr.mxu0 0.0
    %1060 = vmatpush1.msra.mxu0 0.0
    %1061 = vmatprep.subr.mxu0 0.0
    %1062 = vmatpush1.msra.mxu0 0.0
    %1063 = vmatprep.subr.mxu0 0.0
    %1064 = vmatpush1.msra.mxu0 0.0
    %1065 = vmatprep.subr.mxu0 0.0
    %1066 = vmatpush1.msra.mxu0 0.0
    %1067 = vmatprep.subr.mxu0 0.0
    %1068 = vmatpush1.msra.mxu0 0.0
    %1069 = vmatprep.subr.mxu0 0.0
    %1070 = vmatpush1.msra.mxu0 0.0
    %1071 = vmatprep.subr.mxu0 0.0
    %1072 = vmatpush1.msra.mxu0 0.0
    %1073 = vmatprep.subr.mxu0 0.0
    %1074 = vmatpush1.msra.mxu0 0.0
    %1075 = vmatprep.subr.mxu0 0.0
    %1076 = vmatpush1.msra.mxu0 0.0
    %1077 = vmatprep.subr.mxu0 0.0
    %1078 = vmatpush1.msra.mxu0 0.0
    %1079 = vmatprep.subr.mxu0 0.0
    %1080 = vmatpush1.msra.mxu0 0.0
    %1081 = vmatprep.subr.mxu0 0.0
    %1082 = vmatpush1.msra.mxu0 0.0
    %1083 = vmatprep.mubr.f32.mxu0 0.0
    %v1084 = vand.u32 %v685, 4294901760
    %v1085 = vsub.f32 %v685, %v1084
    %v1086 = vand.u32 %v1085, 4294901760
    %1087 = vmatmul.mubr.f32.gmra.mrb[0].mxu0 %v1086
    %v1088 = vpop.f32.mrb[0].mxu0
    %v1089 = vadd.f32 %v991, %v1088
    %v1090 = vpop.f32.mrb[0].mxu0
    %1091 = vmatprep.mubr.f32.mxu0 0.0
    %v1092 = vand.u32 %v688, 4294901760
    %v1093 = vsub.f32 %v688, %v1092
    %v1094 = vand.u32 %v1093, 4294901760
    %1095 = vmatmul.mubr.f32.gmra.mrb[0].mxu0 %v1094
    %v1096 = vpop.f32.mrb[0].mxu0
    %v1097 = vadd.f32 %v998, %v1096
    %v1098 = vpop.f32.mrb[0].mxu0
    %1099 = vmatprep.mubr.f32.mxu0 0.0
    %v1100 = vand.u32 %v691, 4294901760
    %v1101 = vsub.f32 %v691, %v1100
    %v1102 = vand.u32 %v1101, 4294901760
    %1103 = vmatmul.mubr.f32.gmra.mrb[0].mxu0 %v1102
    %v1104 = vpop.f32.mrb[0].mxu0
    %v1105 = vadd.f32 %v1005, %v1104
    %v1106 = vpop.f32.mrb[0].mxu0
    %1107 = vmatprep.mubr.f32.mxu0 0.0
    %v1108 = vand.u32 %v694, 4294901760
    %v1109 = vsub.f32 %v694, %v1108
    %v1110 = vand.u32 %v1109, 4294901760
    %1111 = vmatmul.mubr.f32.gmra.mrb[0].mxu0 %v1110
    %v1112 = vpop.f32.mrb[0].mxu0
    %v1113 = vadd.f32 %v1012, %v1112
    %v1114 = vpop.f32.mrb[0].mxu0
    %1115 = vdwg.mxu0
    %1116 = vmatprep.subr.mxu0 0.0
    %v1117 = vand.u32 %v651, 4294901760
    %v1118 = vsub.f32 %v651, %v1117
    %v1119 = vand.u32 %v1118, 4294901760
    %1120 = vmatpush1.msra.mxu0 %v1119
    %1121 = vmatprep.subr.mxu0 0.0
    %v1122 = vand.u32 %v652, 4294901760
    %v1123 = vsub.f32 %v652, %v1122
    %v1124 = vand.u32 %v1123, 4294901760
    %1125 = vmatpush1.msra.mxu0 %v1124
    %1126 = vmatprep.subr.mxu0 0.0
    %v1127 = vand.u32 %v653, 4294901760
    %v1128 = vsub.f32 %v653, %v1127
    %v1129 = vand.u32 %v1128, 4294901760
    %1130 = vmatpush1.msra.mxu0 %v1129
    %1131 = vmatprep.subr.mxu0 0.0
    %v1132 = vand.u32 %v654, 4294901760
    %v1133 = vsub.f32 %v654, %v1132
    %v1134 = vand.u32 %v1133, 4294901760
    %1135 = vmatpush1.msra.mxu0 %v1134
    %1136 = vmatprep.subr.mxu0 0.0
    %1137 = vmatpush1.msra.mxu0 0.0
    %1138 = vmatprep.subr.mxu0 0.0
    %1139 = vmatpush1.msra.mxu0 0.0
    %1140 = vmatprep.subr.mxu0 0.0
    %1141 = vmatpush1.msra.mxu0 0.0
    %1142 = vmatprep.subr.mxu0 0.0
    %1143 = vmatpush1.msra.mxu0 0.0
    %1144 = vmatprep.subr.mxu0 0.0
    %1145 = vmatpush1.msra.mxu0 0.0
    %1146 = vmatprep.subr.mxu0 0.0
    %1147 = vmatpush1.msra.mxu0 0.0
    %1148 = vmatprep.subr.mxu0 0.0
    %1149 = vmatpush1.msra.mxu0 0.0
    %1150 = vmatprep.subr.mxu0 0.0
    %1151 = vmatpush1.msra.mxu0 0.0
    %1152 = vmatprep.subr.mxu0 0.0
    %1153 = vmatpush1.msra.mxu0 0.0
    %1154 = vmatprep.subr.mxu0 0.0
    %1155 = vmatpush1.msra.mxu0 0.0
    %1156 = vmatprep.subr.mxu0 0.0
    %1157 = vmatpush1.msra.mxu0 0.0
    %1158 = vmatprep.subr.mxu0 0.0
    %1159 = vmatpush1.msra.mxu0 0.0
    %1160 = vmatprep.subr.mxu0 0.0
    %1161 = vmatpush1.msra.mxu0 0.0
    %1162 = vmatprep.subr.mxu0 0.0
    %1163 = vmatpush1.msra.mxu0 0.0
    %1164 = vmatprep.subr.mxu0 0.0
    %1165 = vmatpush1.msra.mxu0 0.0
    %1166 = vmatprep.subr.mxu0 0.0
    %1167 = vmatpush1.msra.mxu0 0.0
    %1168 = vmatprep.subr.mxu0 0.0
    %1169 = vmatpush1.msra.mxu0 0.0
    %1170 = vmatprep.subr.mxu0 0.0
    %1171 = vmatpush1.msra.mxu0 0.0
    %1172 = vmatprep.subr.mxu0 0.0
    %1173 = vmatpush1.msra.mxu0 0.0
    %1174 = vmatprep.subr.mxu0 0.0
    %1175 = vmatpush1.msra.mxu0 0.0
    %1176 = vmatprep.subr.mxu0 0.0
    %1177 = vmatpush1.msra.mxu0 0.0
    %1178 = vmatprep.subr.mxu0 0.0
    %1179 = vmatpush1.msra.mxu0 0.0
    %1180 = vmatprep.subr.mxu0 0.0
    %1181 = vmatpush1.msra.mxu0 0.0
    %1182 = vmatprep.subr.mxu0 0.0
    %1183 = vmatpush1.msra.mxu0 0.0
    %1184 = vmatprep.subr.mxu0 0.0
    %1185 = vmatpush1.msra.mxu0 0.0
    %1186 = vmatprep.subr.mxu0 0.0
    %1187 = vmatpush1.msra.mxu0 0.0
    %1188 = vmatprep.subr.mxu0 0.0
    %1189 = vmatpush1.msra.mxu0 0.0
    %1190 = vmatprep.subr.mxu0 0.0
    %1191 = vmatpush1.msra.mxu0 0.0
    %1192 = vmatprep.mubr.f32.mxu0 0.0
    %v1193 = vand.u32 %v685, 4294901760
    %1194 = vmatmul.mubr.f32.gmra.mrb[0].mxu0 %v1193
    %v1195 = vpop.f32.mrb[0].mxu0
    %v1196 = vadd.f32 %v1089, %v1195
    %v1197 = vpop.f32.mrb[0].mxu0
    %1198 = vmatprep.mubr.f32.mxu0 0.0
    %v1199 = vand.u32 %v688, 4294901760
    %1200 = vmatmul.mubr.f32.gmra.mrb[0].mxu0 %v1199
    %v1201 = vpop.f32.mrb[0].mxu0
    %v1202 = vadd.f32 %v1097, %v1201
    %v1203 = vpop.f32.mrb[0].mxu0
    %1204 = vmatprep.mubr.f32.mxu0 0.0
    %v1205 = vand.u32 %v691, 4294901760
    %1206 = vmatmul.mubr.f32.gmra.mrb[0].mxu0 %v1205
    %v1207 = vpop.f32.mrb[0].mxu0
    %v1208 = vadd.f32 %v1105, %v1207
    %v1209 = vpop.f32.mrb[0].mxu0
    %1210 = vmatprep.mubr.f32.mxu0 0.0
    %v1211 = vand.u32 %v694, 4294901760
    %1212 = vmatmul.mubr.f32.gmra.mrb[0].mxu0 %v1211
    %v1213 = vpop.f32.mrb[0].mxu0
    %v1214 = vadd.f32 %v1113, %v1213
    %v1215 = vpop.f32.mrb[0].mxu0
    %1216 = vdwg.mxu0
    %1217 = vmatprep.subr.mxu0 0.0
    %v1218 = vand.u32 %v651, 4294901760
    %1219 = vmatpush1.msra.mxu0 %v1218
    %1220 = vmatprep.subr.mxu0 0.0
    %v1221 = vand.u32 %v652, 4294901760
    %1222 = vmatpush1.msra.mxu0 %v1221
    %1223 = vmatprep.subr.mxu0 0.0
    %v1224 = vand.u32 %v653, 4294901760
    %1225 = vmatpush1.msra.mxu0 %v1224
    %1226 = vmatprep.subr.mxu0 0.0
    %v1227 = vand.u32 %v654, 4294901760
    %1228 = vmatpush1.msra.mxu0 %v1227
    %1229 = vmatprep.subr.mxu0 0.0
    %1230 = vmatpush1.msra.mxu0 0.0
    %1231 = vmatprep.subr.mxu0 0.0
    %1232 = vmatpush1.msra.mxu0 0.0
    %1233 = vmatprep.subr.mxu0 0.0
    %1234 = vmatpush1.msra.mxu0 0.0
    %1235 = vmatprep.subr.mxu0 0.0
    %1236 = vmatpush1.msra.mxu0 0.0
    %1237 = vmatprep.subr.mxu0 0.0
    %1238 = vmatpush1.msra.mxu0 0.0
    %1239 = vmatprep.subr.mxu0 0.0
    %1240 = vmatpush1.msra.mxu0 0.0
    %1241 = vmatprep.subr.mxu0 0.0
    %1242 = vmatpush1.msra.mxu0 0.0
    %1243 = vmatprep.subr.mxu0 0.0
    %1244 = vmatpush1.msra.mxu0 0.0
    %1245 = vmatprep.subr.mxu0 0.0
    %1246 = vmatpush1.msra.mxu0 0.0
    %1247 = vmatprep.subr.mxu0 0.0
    %1248 = vmatpush1.msra.mxu0 0.0
    %1249 = vmatprep.subr.mxu0 0.0
    %1250 = vmatpush1.msra.mxu0 0.0
    %1251 = vmatprep.subr.mxu0 0.0
    %1252 = vmatpush1.msra.mxu0 0.0
    %1253 = vmatprep.subr.mxu0 0.0
    %1254 = vmatpush1.msra.mxu0 0.0
    %1255 = vmatprep.subr.mxu0 0.0
    %1256 = vmatpush1.msra.mxu0 0.0
    %1257 = vmatprep.subr.mxu0 0.0
    %1258 = vmatpush1.msra.mxu0 0.0
    %1259 = vmatprep.subr.mxu0 0.0
    %1260 = vmatpush1.msra.mxu0 0.0
    %1261 = vmatprep.subr.mxu0 0.0
    %1262 = vmatpush1.msra.mxu0 0.0
    %1263 = vmatprep.subr.mxu0 0.0
    %1264 = vmatpush1.msra.mxu0 0.0
    %1265 = vmatprep.subr.mxu0 0.0
    %1266 = vmatpush1.msra.mxu0 0.0
    %1267 = vmatprep.subr.mxu0 0.0
    %1268 = vmatpush1.msra.mxu0 0.0
    %1269 = vmatprep.subr.mxu0 0.0
    %1270 = vmatpush1.msra.mxu0 0.0
    %1271 = vmatprep.subr.mxu0 0.0
    %1272 = vmatpush1.msra.mxu0 0.0
    %1273 = vmatprep.subr.mxu0 0.0
    %1274 = vmatpush1.msra.mxu0 0.0
    %1275 = vmatprep.subr.mxu0 0.0
    %1276 = vmatpush1.msra.mxu0 0.0
    %1277 = vmatprep.subr.mxu0 0.0
    %1278 = vmatpush1.msra.mxu0 0.0
    %1279 = vmatprep.subr.mxu0 0.0
    %1280 = vmatpush1.msra.mxu0 0.0
    %1281 = vmatprep.subr.mxu0 0.0
    %1282 = vmatpush1.msra.mxu0 0.0
    %1283 = vmatprep.subr.mxu0 0.0
    %1284 = vmatpush1.msra.mxu0 0.0
    %1285 = vmatprep.mubr.f32.mxu0 0.0
    %v1286 = vand.u32 %v685, 4294901760
    %1287 = vmatmul.mubr.f32.gmra.mrb[0].mxu0 %v1286
    %v1288 = vpop.f32.mrb[0].mxu0
    %v1289 = vadd.f32 %v1196, %v1288
    %v1290 = vpop.f32.mrb[0].mxu0
    %1291 = vmatprep.mubr.f32.mxu0 0.0
    %v1292 = vand.u32 %v688, 4294901760
    %1293 = vmatmul.mubr.f32.gmra.mrb[0].mxu0 %v1292
    %v1294 = vpop.f32.mrb[0].mxu0
    %v1295 = vadd.f32 %v1202, %v1294
    %v1296 = vpop.f32.mrb[0].mxu0
    %1297 = vmatprep.mubr.f32.mxu0 0.0
    %v1298 = vand.u32 %v691, 4294901760
    %1299 = vmatmul.mubr.f32.gmra.mrb[0].mxu0 %v1298
    %v1300 = vpop.f32.mrb[0].mxu0
    %v1301 = vadd.f32 %v1208, %v1300
    %v1302 = vpop.f32.mrb[0].mxu0
    %1303 = vmatprep.mubr.f32.mxu0 0.0
    %v1304 = vand.u32 %v694, 4294901760
    %1305 = vmatmul.mubr.f32.gmra.mrb[0].mxu0 %v1304
    %v1306 = vpop.f32.mrb[0].mxu0
    %v1307 = vadd.f32 %v1214, %v1306
    %v1308 = vpop.f32.mrb[0].mxu0
    %1309 = vdwg.mxu0
    %v1310 = vmul.f32 %v1289, 0.01
    %v1311 = vmul.f32 %v1295, 0.01
    %v1312 = vmul.f32 %v1301, 0.01
    %v1313 = vmul.f32 %v1307, 0.01
    %v1314 = vmax.f32 %v1289, %v1310
    %v1315 = vmax.f32 %v1295, %v1311
    %v1316 = vmax.f32 %v1301, %v1312
    %v1317 = vmax.f32 %v1307, %v1313
    %v1318 = vld [vmem:[%s5] sm:$0x3]
    %v1319 = vld [vmem:[%s6] sm:$0x3]
    %1321 = vset.pattern.permute.xlu0 0
    %1322 = vperm.xlu0 %1321, %v1319
    %v1323 = vpop.permute.xlu0 %1322
    %v1326 = vsel %vm683, %v1318, 0
    %1328 = vmatprep.subr.mxu0 0.0
    %v1329 = vand.u32 %v1314, 4294901760
    %1330 = vmatpush1.msra.mxu0 %v1329
    %1331 = vmatprep.subr.mxu0 0.0
    %v1332 = vand.u32 %v1315, 4294901760
    %1333 = vmatpush1.msra.mxu0 %v1332
    %1334 = vmatprep.subr.mxu0 0.0
    %v1335 = vand.u32 %v1316, 4294901760
    %1336 = vmatpush1.msra.mxu0 %v1335
    %1337 = vmatprep.subr.mxu0 0.0
    %v1338 = vand.u32 %v1317, 4294901760
    %1339 = vmatpush1.msra.mxu0 %v1338
    %1340 = vmatprep.subr.mxu0 0.0
    %1341 = vmatpush1.msra.mxu0 0.0
    %1342 = vmatprep.subr.mxu0 0.0
    %1343 = vmatpush1.msra.mxu0 0.0
    %1344 = vmatprep.subr.mxu0 0.0
    %1345 = vmatpush1.msra.mxu0 0.0
    %1346 = vmatprep.subr.mxu0 0.0
    %1347 = vmatpush1.msra.mxu0 0.0
    %1348 = vmatprep.subr.mxu0 0.0
    %1349 = vmatpush1.msra.mxu0 0.0
    %1350 = vmatprep.subr.mxu0 0.0
    %1351 = vmatpush1.msra.mxu0 0.0
    %1352 = vmatprep.subr.mxu0 0.0
    %1353 = vmatpush1.msra.mxu0 0.0
    %1354 = vmatprep.subr.mxu0 0.0
    %1355 = vmatpush1.msra.mxu0 0.0
    %1356 = vmatprep.subr.mxu0 0.0
    %1357 = vmatpush1.msra.mxu0 0.0
    %1358 = vmatprep.subr.mxu0 0.0
    %1359 = vmatpush1.msra.mxu0 0.0
    %1360 = vmatprep.subr.mxu0 0.0
    %1361 = vmatpush1.msra.mxu0 0.0
    %1362 = vmatprep.subr.mxu0 0.0
    %1363 = vmatpush1.msra.mxu0 0.0
    %1364 = vmatprep.subr.mxu0 0.0
    %1365 = vmatpush1.msra.mxu0 0.0
    %1366 = vmatprep.subr.mxu0 0.0
    %1367 = vmatpush1.msra.mxu0 0.0
    %1368 = vmatprep.subr.mxu0 0.0
    %1369 = vmatpush1.msra.mxu0 0.0
    %1370 = vmatprep.subr.mxu0 0.0
    %1371 = vmatpush1.msra.mxu0 0.0
    %1372 = vmatprep.subr.mxu0 0.0
    %1373 = vmatpush1.msra.mxu0 0.0
    %1374 = vmatprep.subr.mxu0 0.0
    %1375 = vmatpush1.msra.mxu0 0.0
    %1376 = vmatprep.subr.mxu0 0.0
    %1377 = vmatpush1.msra.mxu0 0.0
    %1378 = vmatprep.subr.mxu0 0.0
    %1379 = vmatpush1.msra.mxu0 0.0
    %1380 = vmatprep.subr.mxu0 0.0
    %1381 = vmatpush1.msra.mxu0 0.0
    %1382 = vmatprep.subr.mxu0 0.0
    %1383 = vmatpush1.msra.mxu0 0.0
    %1384 = vmatprep.subr.mxu0 0.0
    %1385 = vmatpush1.msra.mxu0 0.0
    %1386 = vmatprep.subr.mxu0 0.0
    %1387 = vmatpush1.msra.mxu0 0.0
    %1388 = vmatprep.subr.mxu0 0.0
    %1389 = vmatpush1.msra.mxu0 0.0
    %1390 = vmatprep.subr.mxu0 0.0
    %1391 = vmatpush1.msra.mxu0 0.0
    %1392 = vmatprep.subr.mxu0 0.0
    %1393 = vmatpush1.msra.mxu0 0.0
    %1394 = vmatprep.subr.mxu0 0.0
    %1395 = vmatpush1.msra.mxu0 0.0
    %1396 = vmatprep.mubr.f32.mxu0 0.0
    %v1397 = vand.u32 %v1326, 4294901760
    %v1398 = vsub.f32 %v1326, %v1397
    %v1399 = vand.u32 %v1398, 4294901760
    %v1400 = vsub.f32 %v1398, %v1399
    %v1401 = vand.u32 %v1400, 4294901760
    %1402 = vmatmul.mubr.f32.gmra.mrb[0].mxu0 %v1401
    %v1403 = vpop.f32.mrb[0].mxu0
    %v1404 = vadd.f32 %v1323, %v1403
    %v1405 = vpop.f32.mrb[0].mxu0
    %1406 = vdwg.mxu0
    %1407 = vmatprep.subr.mxu0 0.0
    %v1408 = vand.u32 %v1314, 4294901760
    %v1409 = vsub.f32 %v1314, %v1408
    %v1410 = vand.u32 %v1409, 4294901760
    %v1411 = vsub.f32 %v1409, %v1410
    %v1412 = vand.u32 %v1411, 4294901760
    %1413 = vmatpush1.msra.mxu0 %v1412
    %1414 = vmatprep.subr.mxu0 0.0
    %v1415 = vand.u32 %v1315, 4294901760
    %v1416 = vsub.f32 %v1315, %v1415
    %v1417 = vand.u32 %v1416, 4294901760
    %v1418 = vsub.f32 %v1416, %v1417
    %v1419 = vand.u32 %v1418, 4294901760
    %1420 = vmatpush1.msra.mxu0 %v1419
    %1421 = vmatprep.subr.mxu0 0.0
    %v1422 = vand.u32 %v1316, 4294901760
    %v1423 = vsub.f32 %v1316, %v1422
    %v1424 = vand.u32 %v1423, 4294901760
    %v1425 = vsub.f32 %v1423, %v1424
    %v1426 = vand.u32 %v1425, 4294901760
    %1427 = vmatpush1.msra.mxu0 %v1426
    %1428 = vmatprep.subr.mxu0 0.0
    %v1429 = vand.u32 %v1317, 4294901760
    %v1430 = vsub.f32 %v1317, %v1429
    %v1431 = vand.u32 %v1430, 4294901760
    %v1432 = vsub.f32 %v1430, %v1431
    %v1433 = vand.u32 %v1432, 4294901760
    %1434 = vmatpush1.msra.mxu0 %v1433
    %1435 = vmatprep.subr.mxu0 0.0
    %1436 = vmatpush1.msra.mxu0 0.0
    %1437 = vmatprep.subr.mxu0 0.0
    %1438 = vmatpush1.msra.mxu0 0.0
    %1439 = vmatprep.subr.mxu0 0.0
    %1440 = vmatpush1.msra.mxu0 0.0
    %1441 = vmatprep.subr.mxu0 0.0
    %1442 = vmatpush1.msra.mxu0 0.0
    %1443 = vmatprep.subr.mxu0 0.0
    %1444 = vmatpush1.msra.mxu0 0.0
    %1445 = vmatprep.subr.mxu0 0.0
    %1446 = vmatpush1.msra.mxu0 0.0
    %1447 = vmatprep.subr.mxu0 0.0
    %1448 = vmatpush1.msra.mxu0 0.0
    %1449 = vmatprep.subr.mxu0 0.0
    %1450 = vmatpush1.msra.mxu0 0.0
    %1451 = vmatprep.subr.mxu0 0.0
    %1452 = vmatpush1.msra.mxu0 0.0
    %1453 = vmatprep.subr.mxu0 0.0
    %1454 = vmatpush1.msra.mxu0 0.0
    %1455 = vmatprep.subr.mxu0 0.0
    %1456 = vmatpush1.msra.mxu0 0.0
    %1457 = vmatprep.subr.mxu0 0.0
    %1458 = vmatpush1.msra.mxu0 0.0
    %1459 = vmatprep.subr.mxu0 0.0
    %1460 = vmatpush1.msra.mxu0 0.0
    %1461 = vmatprep.subr.mxu0 0.0
    %1462 = vmatpush1.msra.mxu0 0.0
    %1463 = vmatprep.subr.mxu0 0.0
    %1464 = vmatpush1.msra.mxu0 0.0
    %1465 = vmatprep.subr.mxu0 0.0
    %1466 = vmatpush1.msra.mxu0 0.0
    %1467 = vmatprep.subr.mxu0 0.0
    %1468 = vmatpush1.msra.mxu0 0.0
    %1469 = vmatprep.subr.mxu0 0.0
    %1470 = vmatpush1.msra.mxu0 0.0
    %1471 = vmatprep.subr.mxu0 0.0
    %1472 = vmatpush1.msra.mxu0 0.0
    %1473 = vmatprep.subr.mxu0 0.0
    %1474 = vmatpush1.msra.mxu0 0.0
    %1475 = vmatprep.subr.mxu0 0.0
    %1476 = vmatpush1.msra.mxu0 0.0
    %1477 = vmatprep.subr.mxu0 0.0
    %1478 = vmatpush1.msra.mxu0 0.0
    %1479 = vmatprep.subr.mxu0 0.0
    %1480 = vmatpush1.msra.mxu0 0.0
    %1481 = vmatprep.subr.mxu0 0.0
    %1482 = vmatpush1.msra.mxu0 0.0
    %1483 = vmatprep.subr.mxu0 0.0
    %1484 = vmatpush1.msra.mxu0 0.0
    %1485 = vmatprep.subr.mxu0 0.0
    %1486 = vmatpush1.msra.mxu0 0.0
    %1487 = vmatprep.subr.mxu0 0.0
    %1488 = vmatpush1.msra.mxu0 0.0
    %1489 = vmatprep.subr.mxu0 0.0
    %1490 = vmatpush1.msra.mxu0 0.0
    %1491 = vmatprep.mubr.f32.mxu0 0.0
    %v1492 = vand.u32 %v1326, 4294901760
    %1493 = vmatmul.mubr.f32.gmra.mrb[0].mxu0 %v1492
    %v1494 = vpop.f32.mrb[0].mxu0
    %v1495 = vadd.f32 %v1404, %v1494
    %v1496 = vpop.f32.mrb[0].mxu0
    %1497 = vdwg.mxu0
    %1498 = vmatprep.subr.mxu0 0.0
    %v1499 = vand.u32 %v1314, 4294901760
    %v1500 = vsub.f32 %v1314, %v1499
    %1501 = vmatpush1.msra.mxu0 %v1500
    %1502 = vmatprep.subr.mxu0 0.0
    %v1503 = vand.u32 %v1315, 4294901760
    %v1504 = vsub.f32 %v1315, %v1503
    %1505 = vmatpush1.msra.mxu0 %v1504
    %1506 = vmatprep.subr.mxu0 0.0
    %v1507 = vand.u32 %v1316, 4294901760
    %v1508 = vsub.f32 %v1316, %v1507
    %1509 = vmatpush1.msra.mxu0 %v1508
    %1510 = vmatprep.subr.mxu0 0.0
    %v1511 = vand.u32 %v1317, 4294901760
    %v1512 = vsub.f32 %v1317, %v1511
    %1513 = vmatpush1.msra.mxu0 %v1512
    %1514 = vmatprep.subr.mxu0 0.0
    %1515 = vmatpush1.msra.mxu0 0.0
    %1516 = vmatprep.subr.mxu0 0.0
    %1517 = vmatpush1.msra.mxu0 0.0
    %1518 = vmatprep.subr.mxu0 0.0
    %1519 = vmatpush1.msra.mxu0 0.0
    %1520 = vmatprep.subr.mxu0 0.0
    %1521 = vmatpush1.msra.mxu0 0.0
    %1522 = vmatprep.subr.mxu0 0.0
    %1523 = vmatpush1.msra.mxu0 0.0
    %1524 = vmatprep.subr.mxu0 0.0
    %1525 = vmatpush1.msra.mxu0 0.0
    %1526 = vmatprep.subr.mxu0 0.0
    %1527 = vmatpush1.msra.mxu0 0.0
    %1528 = vmatprep.subr.mxu0 0.0
    %1529 = vmatpush1.msra.mxu0 0.0
    %1530 = vmatprep.subr.mxu0 0.0
    %1531 = vmatpush1.msra.mxu0 0.0
    %1532 = vmatprep.subr.mxu0 0.0
    %1533 = vmatpush1.msra.mxu0 0.0
    %1534 = vmatprep.subr.mxu0 0.0
    %1535 = vmatpush1.msra.mxu0 0.0
    %1536 = vmatprep.subr.mxu0 0.0
    %1537 = vmatpush1.msra.mxu0 0.0
    %1538 = vmatprep.subr.mxu0 0.0
    %1539 = vmatpush1.msra.mxu0 0.0
    %1540 = vmatprep.subr.mxu0 0.0
    %1541 = vmatpush1.msra.mxu0 0.0
    %1542 = vmatprep.subr.mxu0 0.0
    %1543 = vmatpush1.msra.mxu0 0.0
    %1544 = vmatprep.subr.mxu0 0.0
    %1545 = vmatpush1.msra.mxu0 0.0
    %1546 = vmatprep.subr.mxu0 0.0
    %1547 = vmatpush1.msra.mxu0 0.0
    %1548 = vmatprep.subr.mxu0 0.0
    %1549 = vmatpush1.msra.mxu0 0.0
    %1550 = vmatprep.subr.mxu0 0.0
    %1551 = vmatpush1.msra.mxu0 0.0
    %1552 = vmatprep.subr.mxu0 0.0
    %1553 = vmatpush1.msra.mxu0 0.0
    %1554 = vmatprep.subr.mxu0 0.0
    %1555 = vmatpush1.msra.mxu0 0.0
    %1556 = vmatprep.subr.mxu0 0.0
    %1557 = vmatpush1.msra.mxu0 0.0
    %1558 = vmatprep.subr.mxu0 0.0
    %1559 = vmatpush1.msra.mxu0 0.0
    %1560 = vmatprep.subr.mxu0 0.0
    %1561 = vmatpush1.msra.mxu0 0.0
    %1562 = vmatprep.subr.mxu0 0.0
    %1563 = vmatpush1.msra.mxu0 0.0
    %1564 = vmatprep.subr.mxu0 0.0
    %1565 = vmatpush1.msra.mxu0 0.0
    %1566 = vmatprep.subr.mxu0 0.0
    %1567 = vmatpush1.msra.mxu0 0.0
    %1568 = vmatprep.subr.mxu0 0.0
    %1569 = vmatpush1.msra.mxu0 0.0
    %1570 = vmatprep.mubr.f32.mxu0 0.0
    %v1571 = vand.u32 %v1326, 4294901760
    %v1572 = vsub.f32 %v1326, %v1571
    %1573 = vmatmul.mubr.f32.gmra.mrb[0].mxu0 %v1572
    %v1574 = vpop.f32.mrb[0].mxu0
    %v1575 = vadd.f32 %v1495, %v1574
    %v1576 = vpop.f32.mrb[0].mxu0
    %1577 = vdwg.mxu0
    %1578 = vmatprep.subr.mxu0 0.0
    %v1579 = vand.u32 %v1314, 4294901760
    %1580 = vmatpush1.msra.mxu0 %v1579
    %1581 = vmatprep.subr.mxu0 0.0
    %v1582 = vand.u32 %v1315, 4294901760
    %1583 = vmatpush1.msra.mxu0 %v1582
    %1584 = vmatprep.subr.mxu0 0.0
    %v1585 = vand.u32 %v1316, 4294901760
    %1586 = vmatpush1.msra.mxu0 %v1585
    %1587 = vmatprep.subr.mxu0 0.0
    %v1588 = vand.u32 %v1317, 4294901760
    %1589 = vmatpush1.msra.mxu0 %v1588
    %1590 = vmatprep.subr.mxu0 0.0
    %1591 = vmatpush1.msra.mxu0 0.0
    %1592 = vmatprep.subr.mxu0 0.0
    %1593 = vmatpush1.msra.mxu0 0.0
    %1594 = vmatprep.subr.mxu0 0.0
    %1595 = vmatpush1.msra.mxu0 0.0
    %1596 = vmatprep.subr.mxu0 0.0
    %1597 = vmatpush1.msra.mxu0 0.0
    %1598 = vmatprep.subr.mxu0 0.0
    %1599 = vmatpush1.msra.mxu0 0.0
    %1600 = vmatprep.subr.mxu0 0.0
    %1601 = vmatpush1.msra.mxu0 0.0
    %1602 = vmatprep.subr.mxu0 0.0
    %1603 = vmatpush1.msra.mxu0 0.0
    %1604 = vmatprep.subr.mxu0 0.0
    %1605 = vmatpush1.msra.mxu0 0.0
    %1606 = vmatprep.subr.mxu0 0.0
    %1607 = vmatpush1.msra.mxu0 0.0
    %1608 = vmatprep.subr.mxu0 0.0
    %1609 = vmatpush1.msra.mxu0 0.0
    %1610 = vmatprep.subr.mxu0 0.0
    %1611 = vmatpush1.msra.mxu0 0.0
    %1612 = vmatprep.subr.mxu0 0.0
    %1613 = vmatpush1.msra.mxu0 0.0
    %1614 = vmatprep.subr.mxu0 0.0
    %1615 = vmatpush1.msra.mxu0 0.0
    %1616 = vmatprep.subr.mxu0 0.0
    %1617 = vmatpush1.msra.mxu0 0.0
    %1618 = vmatprep.subr.mxu0 0.0
    %1619 = vmatpush1.msra.mxu0 0.0
    %1620 = vmatprep.subr.mxu0 0.0
    %1621 = vmatpush1.msra.mxu0 0.0
    %1622 = vmatprep.subr.mxu0 0.0
    %1623 = vmatpush1.msra.mxu0 0.0
    %1624 = vmatprep.subr.mxu0 0.0
    %1625 = vmatpush1.msra.mxu0 0.0
    %1626 = vmatprep.subr.mxu0 0.0
    %1627 = vmatpush1.msra.mxu0 0.0
    %1628 = vmatprep.subr.mxu0 0.0
    %1629 = vmatpush1.msra.mxu0 0.0
    %1630 = vmatprep.subr.mxu0 0.0
    %1631 = vmatpush1.msra.mxu0 0.0
    %1632 = vmatprep.subr.mxu0 0.0
    %1633 = vmatpush1.msra.mxu0 0.0
    %1634 = vmatprep.subr.mxu0 0.0
    %1635 = vmatpush1.msra.mxu0 0.0
    %1636 = vmatprep.subr.mxu0 0.0
    %1637 = vmatpush1.msra.mxu0 0.0
    %1638 = vmatprep.subr.mxu0 0.0
    %1639 = vmatpush1.msra.mxu0 0.0
    %1640 = vmatprep.subr.mxu0 0.0
    %1641 = vmatpush1.msra.mxu0 0.0
    %1642 = vmatprep.subr.mxu0 0.0
    %1643 = vmatpush1.msra.mxu0 0.0
    %1644 = vmatprep.subr.mxu0 0.0
    %1645 = vmatpush1.msra.mxu0 0.0
    %1646 = vmatprep.mubr.f32.mxu0 0.0
    %v1647 = vand.u32 %v1326, 4294901760
    %v1648 = vsub.f32 %v1326, %v1647
    %v1649 = vand.u32 %v1648, 4294901760
    %1650 = vmatmul.mubr.f32.gmra.mrb[0].mxu0 %v1649
    %v1651 = vpop.f32.mrb[0].mxu0
    %v1652 = vadd.f32 %v1575, %v1651
    %v1653 = vpop.f32.mrb[0].mxu0
    %1654 = vdwg.mxu0
    %1655 = vmatprep.subr.mxu0 0.0
    %v1656 = vand.u32 %v1314, 4294901760
    %v1657 = vsub.f32 %v1314, %v1656
    %v1658 = vand.u32 %v1657, 4294901760
    %1659 = vmatpush1.msra.mxu0 %v1658
    %1660 = vmatprep.subr.mxu0 0.0
    %v1661 = vand.u32 %v1315, 4294901760
    %v1662 = vsub.f32 %v1315, %v1661
    %v1663 = vand.u32 %v1662, 4294901760
    %1664 = vmatpush1.msra.mxu0 %v1663
    %1665 = vmatprep.subr.mxu0 0.0
    %v1666 = vand.u32 %v1316, 4294901760
    %v1667 = vsub.f32 %v1316, %v1666
    %v1668 = vand.u32 %v1667, 4294901760
    %1669 = vmatpush1.msra.mxu0 %v1668
    %1670 = vmatprep.subr.mxu0 0.0
    %v1671 = vand.u32 %v1317, 4294901760
    %v1672 = vsub.f32 %v1317, %v1671
    %v1673 = vand.u32 %v1672, 4294901760
    %1674 = vmatpush1.msra.mxu0 %v1673
    %1675 = vmatprep.subr.mxu0 0.0
    %1676 = vmatpush1.msra.mxu0 0.0
    %1677 = vmatprep.subr.mxu0 0.0
    %1678 = vmatpush1.msra.mxu0 0.0
    %1679 = vmatprep.subr.mxu0 0.0
    %1680 = vmatpush1.msra.mxu0 0.0
    %1681 = vmatprep.subr.mxu0 0.0
    %1682 = vmatpush1.msra.mxu0 0.0
    %1683 = vmatprep.subr.mxu0 0.0
    %1684 = vmatpush1.msra.mxu0 0.0
    %1685 = vmatprep.subr.mxu0 0.0
    %1686 = vmatpush1.msra.mxu0 0.0
    %1687 = vmatprep.subr.mxu0 0.0
    %1688 = vmatpush1.msra.mxu0 0.0
    %1689 = vmatprep.subr.mxu0 0.0
    %1690 = vmatpush1.msra.mxu0 0.0
    %1691 = vmatprep.subr.mxu0 0.0
    %1692 = vmatpush1.msra.mxu0 0.0
    %1693 = vmatprep.subr.mxu0 0.0
    %1694 = vmatpush1.msra.mxu0 0.0
    %1695 = vmatprep.subr.mxu0 0.0
    %1696 = vmatpush1.msra.mxu0 0.0
    %1697 = vmatprep.subr.mxu0 0.0
    %1698 = vmatpush1.msra.mxu0 0.0
    %1699 = vmatprep.subr.mxu0 0.0
    %1700 = vmatpush1.msra.mxu0 0.0
    %1701 = vmatprep.subr.mxu0 0.0
    %1702 = vmatpush1.msra.mxu0 0.0
    %1703 = vmatprep.subr.mxu0 0.0
    %1704 = vmatpush1.msra.mxu0 0.0
    %1705 = vmatprep.subr.mxu0 0.0
    %1706 = vmatpush1.msra.mxu0 0.0
    %1707 = vmatprep.subr.mxu0 0.0
    %1708 = vmatpush1.msra.mxu0 0.0
    %1709 = vmatprep.subr.mxu0 0.0
    %1710 = vmatpush1.msra.mxu0 0.0
    %1711 = vmatprep.subr.mxu0 0.0
    %1712 = vmatpush1.msra.mxu0 0.0
    %1713 = vmatprep.subr.mxu0 0.0
    %1714 = vmatpush1.msra.mxu0 0.0
    %1715 = vmatprep.subr.mxu0 0.0
    %1716 = vmatpush1.msra.mxu0 0.0
    %1717 = vmatprep.subr.mxu0 0.0
    %1718 = vmatpush1.msra.mxu0 0.0
    %1719 = vmatprep.subr.mxu0 0.0
    %1720 = vmatpush1.msra.mxu0 0.0
    %1721 = vmatprep.subr.mxu0 0.0
    %1722 = vmatpush1.msra.mxu0 0.0
    %1723 = vmatprep.subr.mxu0 0.0
    %1724 = vmatpush1.msra.mxu0 0.0
    %1725 = vmatprep.subr.mxu0 0.0
    %1726 = vmatpush1.msra.mxu0 0.0
    %1727 = vmatprep.subr.mxu0 0.0
    %1728 = vmatpush1.msra.mxu0 0.0
    %1729 = vmatprep.subr.mxu0 0.0
    %1730 = vmatpush1.msra.mxu0 0.0
    %1731 = vmatprep.mubr.f32.mxu0 0.0
    %v1732 = vand.u32 %v1326, 4294901760
    %1733 = vmatmul.mubr.f32.gmra.mrb[0].mxu0 %v1732
    %v1734 = vpop.f32.mrb[0].mxu0
    %v1735 = vadd.f32 %v1652, %v1734
    %v1736 = vpop.f32.mrb[0].mxu0
    %1737 = vdwg.mxu0
    %1738 = vmatprep.subr.mxu0 0.0
    %v1739 = vand.u32 %v1314, 4294901760
    %1740 = vmatpush1.msra.mxu0 %v1739
    %1741 = vmatprep.subr.mxu0 0.0
    %v1742 = vand.u32 %v1315, 4294901760
    %1743 = vmatpush1.msra.mxu0 %v1742
    %1744 = vmatprep.subr.mxu0 0.0
    %v1745 = vand.u32 %v1316, 4294901760
    %1746 = vmatpush1.msra.mxu0 %v1745
    %1747 = vmatprep.subr.mxu0 0.0
    %v1748 = vand.u32 %v1317, 4294901760
    %1749 = vmatpush1.msra.mxu0 %v1748
    %1750 = vmatprep.subr.mxu0 0.0
    %1751 = vmatpush1.msra.mxu0 0.0
    %1752 = vmatprep.subr.mxu0 0.0
    %1753 = vmatpush1.msra.mxu0 0.0
    %1754 = vmatprep.subr.mxu0 0.0
    %1755 = vmatpush1.msra.mxu0 0.0
    %1756 = vmatprep.subr.mxu0 0.0
    %1757 = vmatpush1.msra.mxu0 0.0
    %1758 = vmatprep.subr.mxu0 0.0
    %1759 = vmatpush1.msra.mxu0 0.0
    %1760 = vmatprep.subr.mxu0 0.0
    %1761 = vmatpush1.msra.mxu0 0.0
    %1762 = vmatprep.subr.mxu0 0.0
    %1763 = vmatpush1.msra.mxu0 0.0
    %1764 = vmatprep.subr.mxu0 0.0
    %1765 = vmatpush1.msra.mxu0 0.0
    %1766 = vmatprep.subr.mxu0 0.0
    %1767 = vmatpush1.msra.mxu0 0.0
    %1768 = vmatprep.subr.mxu0 0.0
    %1769 = vmatpush1.msra.mxu0 0.0
    %1770 = vmatprep.subr.mxu0 0.0
    %1771 = vmatpush1.msra.mxu0 0.0
    %1772 = vmatprep.subr.mxu0 0.0
    %1773 = vmatpush1.msra.mxu0 0.0
    %1774 = vmatprep.subr.mxu0 0.0
    %1775 = vmatpush1.msra.mxu0 0.0
    %1776 = vmatprep.subr.mxu0 0.0
    %1777 = vmatpush1.msra.mxu0 0.0
    %1778 = vmatprep.subr.mxu0 0.0
    %1779 = vmatpush1.msra.mxu0 0.0
    %1780 = vmatprep.subr.mxu0 0.0
    %1781 = vmatpush1.msra.mxu0 0.0
    %1782 = vmatprep.subr.mxu0 0.0
    %1783 = vmatpush1.msra.mxu0 0.0
    %1784 = vmatprep.subr.mxu0 0.0
    %1785 = vmatpush1.msra.mxu0 0.0
    %1786 = vmatprep.subr.mxu0 0.0
    %1787 = vmatpush1.msra.mxu0 0.0
    %1788 = vmatprep.subr.mxu0 0.0
    %1789 = vmatpush1.msra.mxu0 0.0
    %1790 = vmatprep.subr.mxu0 0.0
    %1791 = vmatpush1.msra.mxu0 0.0
    %1792 = vmatprep.subr.mxu0 0.0
    %1793 = vmatpush1.msra.mxu0 0.0
    %1794 = vmatprep.subr.mxu0 0.0
    %1795 = vmatpush1.msra.mxu0 0.0
    %1796 = vmatprep.subr.mxu0 0.0
    %1797 = vmatpush1.msra.mxu0 0.0
    %1798 = vmatprep.subr.mxu0 0.0
    %1799 = vmatpush1.msra.mxu0 0.0
    %1800 = vmatprep.subr.mxu0 0.0
    %1801 = vmatpush1.msra.mxu0 0.0
    %1802 = vmatprep.subr.mxu0 0.0
    %1803 = vmatpush1.msra.mxu0 0.0
    %1804 = vmatprep.subr.mxu0 0.0
    %1805 = vmatpush1.msra.mxu0 0.0
    %1806 = vmatprep.mubr.f32.mxu0 0.0
    %v1807 = vand.u32 %v1326, 4294901760
    %1808 = vmatmul.mubr.f32.gmra.mrb[0].mxu0 %v1807
    %v1809 = vpop.f32.mrb[0].mxu0
    %v1810 = vadd.f32 %v1735, %v1809
    %v1811 = vpop.f32.mrb[0].mxu0
    %1812 = vdwg.mxu0
    %vm1813 = vcmask 57344
    %1814 = vst.msk [vmem:[#allocation2] sm:$0x1] %vm1813, %v1810
    %v1815 = vmax.f32 %v1810, 0.0
    %v1816 = vadd.f32 %v1815, 1e-06
    %vm1817 = vcmask 58369
    %1818 = vst.msk [vmem:[#allocation2] sm:$0x2] %vm1817, %v1816
    // Predicated region
    $region30: #{tpu_custom_call.1} parent=1 // pred_check
      _
    $region31: #{tpu_custom_call.1} parent=1 // pred_check_branch
      %1820 = sbr.rel (0) target = $region33
    $region32: #{tpu_custom_call.1} parent=1 // pred_region
      %s1822 = ssub.s32 32, 32
      %1823 = vsyncadd [#allocation3], %s1822
      %s1825 = sshll.u32 [#allocation2], 4
      %s1826 = int_to_ptr.vmem [resolvable:$true] %s1825
      %1828 = dma.vmem_to_hbm [thread:$0]  %s1826, 32, %s7, [#allocation3]
    $region33: #{tpu_custom_call.1} parent=1 // pred_fallthru
      _
    // Predicated region
    $region34: #{tpu_custom_call.1} parent=1 // pred_check
      _
    $region35: #{tpu_custom_call.1} parent=1 // pred_check_branch
      %1830 = sbr.rel (0) target = $region37
    $region36: #{tpu_custom_call.1} parent=1 // pred_region
      %1831 = dma.done [#allocation3], 32
    $region37: #{tpu_custom_call.1} parent=1 // pred_fallthru
      _
    %1832 = vsyncpa [#allocation3], 1

</llo_original>
